<compile_context>
chip_gen: v7x
topology: tpu7x:2x2x1
jax: 0.10.0
libtpu: 0.0.40
codegen_flags: <defaults>
</compile_context>

<pallas_src>
import numpy as np
import jax
import jax.numpy as jnp
from jax.experimental import pallas as pl
from jax.experimental.pallas import tpu as pltpu


# ----------------------------------------------------------------- host-side weight re-layout

def _conv3x3_band_weight(w, width, pool_cols):
    """Conv2d(k=3, pad=1) weight (Cout,Cin,3,3) -> banded slab weight.

    Returns (3*(width+2)*Cin, width*Cout). Row index = dy*(Wp*Cin) + xp*Cin + ci
    (xp = padded column). Column index = x*Cout + co, or, if pool_cols, the
    2x2-maxpool-friendly permutation ((x%2)*(width//2) + x//2)*Cout + co.
    """
    w = np.asarray(w, np.float32)
    cout, cin, _, _ = w.shape
    wp = width + 2
    m = np.zeros((3 * wp * cin, width * cout), np.float32)
    wt = np.transpose(w, (2, 3, 1, 0))  # (dy, dx, cin, cout)
    for x in range(width):
        xo = (x % 2) * (width // 2) + (x // 2) if pool_cols else x
        c0 = xo * cout
        for dy in range(3):
            for dx in range(3):
                r0 = dy * wp * cin + (x + dx) * cin
                m[r0:r0 + cin, c0:c0 + cout] = wt[dy, dx]
    return m


def _deconv2x2_band_weight(w, width, py):
    """ConvTranspose2d(k=2,s=2) weight (Cin,Cout,2,2) -> per-row-parity slab weight.

    Returns (width*Cin, 2*width*Cout) with the px interleave baked into the columns.
    """
    w = np.asarray(w, np.float32)
    cin, cout = w.shape[:2]
    m = np.zeros((width * cin, 2 * width * cout), np.float32)
    for x in range(width):
        for px in range(2):
            m[x * cin:(x + 1) * cin,
              (2 * x + px) * cout:(2 * x + px + 1) * cout] = w[:, :, py, px]
    return m


def _conv1x1_band_weight(w, width):
    """Conv2d(k=1) weight (Cout,Cin,1,1) -> block-diagonal slab weight (width*Cin, width*Cout)."""
    w = np.asarray(w, np.float32)
    cout, cin = w.shape[:2]
    m = np.zeros((width * cin, width * cout), np.float32)
    for x in range(width):
        m[x * cin:(x + 1) * cin, x * cout:(x + 1) * cout] = w[:, :, 0, 0].T
    return m


def prepare_params(params):
    """One-time host-side weight re-layout (outside the jitted forward)."""
    return {
        "wc0": jnp.asarray(_conv3x3_band_weight(params["w0"], 16, pool_cols=True)),   # (54, 96)
        "wc1": jnp.asarray(_conv3x3_band_weight(params["w1"], 8, pool_cols=True)),    # (180, 128)
        "wc2": jnp.asarray(_conv3x3_band_weight(params["w2"], 4, pool_cols=False)),   # (288, 64)
        "wc3": jnp.asarray(_conv3x3_band_weight(params["w3"], 9, pool_cols=False)),   # (528, 54)
        "wd0_0": jnp.asarray(_deconv2x2_band_weight(params["wd_up0"], 4, 0)),         # (64, 128)
        "wd0_1": jnp.asarray(_deconv2x2_band_weight(params["wd_up0"], 4, 1)),
        "wd1_0": jnp.asarray(_deconv2x2_band_weight(params["wd_up1"], 9, 0)),         # (54, 108)
        "wd1_1": jnp.asarray(_deconv2x2_band_weight(params["wd_up1"], 9, 1)),
        "w4": jnp.asarray(_conv1x1_band_weight(params["w4"], 18)),                    # (108, 18)
    }


# ----------------------------------------------------------------- fused forward kernel

def _autoencoder_kernel(x_ref, wc0, wc1, wc2, wc3, wd00, wd01, wd10, wd11, w4,
                        out_ref, p0, t0, p1, t1, p2, p3, p4):
    f32 = jnp.float32

    def conv3x3_relu(pref, wref):
        """Padded row-slab (Hp, Wp*Cin) x banded weight (3*Wp*Cin, .) -> relu'd (H, .)."""
        hp, k = pref.shape
        h = hp - 2
        acc = jnp.dot(pref[0:h, :], wref[0:k, :], preferred_element_type=f32)
        acc = acc + jnp.dot(pref[1:h + 1, :], wref[k:2 * k, :], preferred_element_type=f32)
        acc = acc + jnp.dot(pref[2:h + 2, :], wref[2 * k:3 * k, :], preferred_element_type=f32)
        return jnp.maximum(acc, 0.0)

    # conv2d_0 (1->6, 16x16, pad=1) + ReLU + MaxPool2d(2) -> 8x8x6
    p0[...] = jnp.zeros_like(p0)
    p0[1:17, 1:17] = x_ref[0]
    y0 = conv3x3_relu(p0, wc0)                              # (16, 96), cols = (px, x2, c)
    t0[...] = jnp.maximum(y0[:, :48], y0[:, 48:])           # width pool (px)   -> (16, 48)
    pool0 = jnp.maximum(t0[pl.ds(0, 8, stride=2), :],       # height pool (py)  -> (8, 48)
                        t0[pl.ds(1, 8, stride=2), :])

    # conv2d_1 (6->16, 8x8, pad=1) + ReLU + MaxPool2d(2) -> 4x4x16
    p1[...] = jnp.zeros_like(p1)
    p1[1:9, 6:54] = pool0
    y1 = conv3x3_relu(p1, wc1)                              # (8, 128)
    t1[...] = jnp.maximum(y1[:, :64], y1[:, 64:])           # (8, 64)
    pool1 = jnp.maximum(t1[pl.ds(0, 4, stride=2), :],
                        t1[pl.ds(1, 4, stride=2), :])       # (4, 64)

    # conv2d_2 (16->16, 4x4, pad=1) + ReLU
    p2[...] = jnp.zeros_like(p2)
    p2[1:5, 16:80] = pool1
    y2 = conv3x3_relu(p2, wc2)                              # (4, 64)

    # up_sample0: ConvTranspose2d(16,16,k=2,s=2) -> 8x8, then F.pad(0,1,0,1) -> 9x9.
    # Written straight into conv2d_3's zero-padded slab (F.pad + conv padding = the zeros).
    p3[...] = jnp.zeros_like(p3)
    for py, wref in ((0, wd00), (1, wd01)):
        v = jnp.dot(y2, wref[...], preferred_element_type=f32)        # (4, 128)
        for yy in range(4):
            p3[1 + 2 * yy + py:2 + 2 * yy + py, 16:144] = v[yy:yy + 1, :]

    # conv2d_3 (16->6, 9x9, pad=1) + ReLU
    y3 = conv3x3_relu(p3, wc3)                              # (9, 54)

    # up_sample1: ConvTranspose2d(6,6,k=2,s=2) -> 18x18 (no pad)
    for py, wref in ((0, wd10), (1, wd11)):
        v = jnp.dot(y3, wref[...], preferred_element_type=f32)        # (9, 108)
        for yy in range(9):
            p4[2 * yy + py:2 * yy + py + 1, :] = v[yy:yy + 1, :]

    # conv2d_4 (1x1, 6->1) + Sigmoid
    z = jnp.dot(p4[...], w4[...], preferred_element_type=f32)         # (18, 18)
    out_ref[0] = 1.0 / (1.0 + jnp.exp(-z))


def autoencoder_forward(x_nchw, prepped):
    n = x_nchw.shape[0]
    assert x_nchw.shape[1:] == (1, 16, 16), x_nchw.shape
    x = x_nchw.reshape(n, 16, 16).astype(jnp.float32)

    weights = [prepped[k] for k in
               ("wc0", "wc1", "wc2", "wc3", "wd0_0", "wd0_1", "wd1_0", "wd1_1", "w4")]
    in_specs = [pl.BlockSpec((1, 16, 16), lambda i: (i, 0, 0))]
    in_specs += [pl.BlockSpec(w.shape, lambda i: (0, 0)) for w in weights]

    out = pl.pallas_call(
        _autoencoder_kernel,
        out_shape=jax.ShapeDtypeStruct((n, 18, 18), jnp.float32),
        grid=(n,),
        in_specs=in_specs,
        out_specs=pl.BlockSpec((1, 18, 18), lambda i: (i, 0, 0)),
        scratch_shapes=[
            pltpu.VMEM((18, 18), jnp.float32),    # p0: conv0 padded input slab
            pltpu.VMEM((16, 48), jnp.float32),    # t0: conv0 width-pooled output
            pltpu.VMEM((10, 60), jnp.float32),    # p1: conv1 padded input slab
            pltpu.VMEM((8, 64), jnp.float32),     # t1: conv1 width-pooled output
            pltpu.VMEM((6, 96), jnp.float32),     # p2: conv2 padded input slab
            pltpu.VMEM((11, 176), jnp.float32),   # p3: conv3 padded input slab (deconv0 + F.pad)
            pltpu.VMEM((18, 108), jnp.float32),   # p4: conv4 input slab (deconv1 output)
        ],
        compiler_params=pltpu.CompilerParams(dimension_semantics=("parallel",)),
    )(x, *weights)
    return out.reshape(n, 1, 18, 18)


# ----------------------------------------------------------------- plain-JAX reference (validation)

def _reference_forward(x_nchw, params):
    def conv3x3_relu(x, w):
        n, h, wd, ci = x.shape
        co = w.shape[0]
        xp = jnp.pad(x, ((0, 0), (1, 1), (1, 1), (0, 0)))
        cols = jnp.concatenate(
            [xp[:, dy:dy + h, dx:dx + wd, :] for dy in range(3) for dx in range(3)], axis=-1)
        w2 = jnp.transpose(w, (2, 3, 1, 0)).reshape(9 * ci, co)
        y = cols.reshape(n * h * wd, 9 * ci) @ w2
        return jnp.maximum(y, 0.0).reshape(n, h, wd, co)

    def maxpool2(x):
        return jnp.maximum(jnp.maximum(x[:, 0::2, 0::2, :], x[:, 0::2, 1::2, :]),
                           jnp.maximum(x[:, 1::2, 0::2, :], x[:, 1::2, 1::2, :]))

    def deconv2x2(x, w):
        n, h, wd, ci = x.shape
        co = w.shape[1]
        w2 = jnp.transpose(w, (0, 2, 3, 1)).reshape(ci, 4 * co)
        y = (x.reshape(n * h * wd, ci) @ w2).reshape(n, h, wd, 2, 2, co)
        return y.transpose(0, 1, 3, 2, 4, 5).reshape(n, 2 * h, 2 * wd, co)

    x = jnp.transpose(x_nchw, (0, 2, 3, 1))
    x = maxpool2(conv3x3_relu(x, params["w0"]))
    x = maxpool2(conv3x3_relu(x, params["w1"]))
    x = conv3x3_relu(x, params["w2"])
    x = deconv2x2(x, params["wd_up0"])
    x = jnp.pad(x, ((0, 0), (0, 1), (0, 1), (0, 0)))
    x = conv3x3_relu(x, params["w3"])
    x = deconv2x2(x, params["wd_up1"])
    n, h, wd, _ = x.shape
    y = x.reshape(n * h * wd, 6) @ params["w4"][:, :, 0, 0].T
    y = 1.0 / (1.0 + jnp.exp(-y))
    return jnp.transpose(y.reshape(n, h, wd, 1), (0, 3, 1, 2))


# ----------------------------------------------------------------- main

if __name__ == "__main__":
    key = jax.random.PRNGKey(0)
    kx, kp = jax.random.split(key)
    # Input implied by the model: 1 input channel. batch=2, spatial=16x16 (NCHW).
    x = jax.random.normal(kx, (2, 1, 16, 16), jnp.float32)

    pkeys = jax.random.split(kp, 7)
    params = {
        # Conv2d weights: (Cout, Cin, kH, kW)
        "w0": 0.30 * jax.random.normal(pkeys[0], (6, 1, 3, 3), jnp.float32),
        "w1": 0.20 * jax.random.normal(pkeys[1], (16, 6, 3, 3), jnp.float32),
        "w2": 0.15 * jax.random.normal(pkeys[2], (16, 16, 3, 3), jnp.float32),
        "w3": 0.15 * jax.random.normal(pkeys[3], (6, 16, 3, 3), jnp.float32),
        "w4": 0.30 * jax.random.normal(pkeys[4], (1, 6, 1, 1), jnp.float32),
        # ConvTranspose2d weights: (Cin, Cout, kH, kW)
        "wd_up0": 0.20 * jax.random.normal(pkeys[5], (16, 16, 2, 2), jnp.float32),
        "wd_up1": 0.20 * jax.random.normal(pkeys[6], (6, 6, 2, 2), jnp.float32),
    }

    prepped = prepare_params(params)                 # one-time weight re-layout (host side)
    out = jax.jit(autoencoder_forward)(x, prepped)
    out = jax.block_until_ready(out)

    assert out.shape == (2, 1, 18, 18), out.shape
    assert bool(jnp.all(jnp.isfinite(out)))
    assert bool(jnp.all((out >= 0.0) & (out <= 1.0)))   # sigmoid output range

    ref = _reference_forward(x, params)
    err = float(jnp.max(jnp.abs(out - ref)))
    assert err < 3e-2, f"mismatch vs plain-JAX reference: {err}"

    print("KERNEL_OK")
</pallas_src>

<mosaic_0001>
module attributes {stable_mosaic.version = 11 : i64} {
  func.func @_autoencoder_kernel(%arg0: i32, %arg1: memref<1x16x16xf32, #tpu.memory_space<vmem>>, %arg2: memref<54x96xf32, #tpu.memory_space<vmem>>, %arg3: memref<180x128xf32, #tpu.memory_space<vmem>>, %arg4: memref<288x64xf32, #tpu.memory_space<vmem>>, %arg5: memref<528x54xf32, #tpu.memory_space<vmem>>, %arg6: memref<64x128xf32, #tpu.memory_space<vmem>>, %arg7: memref<64x128xf32, #tpu.memory_space<vmem>>, %arg8: memref<54x108xf32, #tpu.memory_space<vmem>>, %arg9: memref<54x108xf32, #tpu.memory_space<vmem>>, %arg10: memref<108x18xf32, #tpu.memory_space<vmem>>, %arg11: memref<1x18x18xf32, #tpu.memory_space<vmem>>, %arg12: memref<18x18xf32, #tpu.memory_space<vmem>>, %arg13: memref<16x48xf32, #tpu.memory_space<vmem>>, %arg14: memref<10x60xf32, #tpu.memory_space<vmem>>, %arg15: memref<8x64xf32, #tpu.memory_space<vmem>>, %arg16: memref<6x96xf32, #tpu.memory_space<vmem>>, %arg17: memref<11x176xf32, #tpu.memory_space<vmem>>, %arg18: memref<18x108xf32, #tpu.memory_space<vmem>>) attributes {dimension_semantics = [#tpu.dimension_semantics<parallel>], iteration_bounds = array<i64: 2>, scalar_prefetch = 0 : i64, scratch_operands = 7 : i64, tpu.core_type = #tpu.core_type<tc>, window_params = [{transform_indices = @transform_0, window_bounds = array<i64: 1, 16, 16>}, {pipeline_mode = #tpu.pipeline_mode<synchronous>, transform_indices = @transform_1, window_bounds = array<i64: 54, 96>}, {pipeline_mode = #tpu.pipeline_mode<synchronous>, transform_indices = @transform_2, window_bounds = array<i64: 180, 128>}, {pipeline_mode = #tpu.pipeline_mode<synchronous>, transform_indices = @transform_3, window_bounds = array<i64: 288, 64>}, {pipeline_mode = #tpu.pipeline_mode<synchronous>, transform_indices = @transform_4, window_bounds = array<i64: 528, 54>}, {pipeline_mode = #tpu.pipeline_mode<synchronous>, transform_indices = @transform_5, window_bounds = array<i64: 64, 128>}, {pipeline_mode = #tpu.pipeline_mode<synchronous>, transform_indices = @transform_6, window_bounds = array<i64: 64, 128>}, {pipeline_mode = #tpu.pipeline_mode<synchronous>, transform_indices = @transform_7, window_bounds = array<i64: 54, 108>}, {pipeline_mode = #tpu.pipeline_mode<synchronous>, transform_indices = @transform_8, window_bounds = array<i64: 54, 108>}, {pipeline_mode = #tpu.pipeline_mode<synchronous>, transform_indices = @transform_9, window_bounds = array<i64: 108, 18>}, {transform_indices = @transform_10, window_bounds = array<i64: 1, 18, 18>}]} {
    %cst = arith.constant 0.000000e+00 : f32
    %0 = vector.broadcast %cst : f32 to vector<18x18xf32>
    %c0 = arith.constant 0 : index
    %c0_0 = arith.constant 0 : index
    %1 = vector.load %arg12[%c0, %c0_0] : memref<18x18xf32, #tpu.memory_space<vmem>>, vector<18x18xf32>
    tpu.vector_store %arg12[%c0, %c0_0], %0 {strides = array<i32>} : memref<18x18xf32, #tpu.memory_space<vmem>>, vector<18x18xf32>,
    %c0_1 = arith.constant 0 : index
    %c0_2 = arith.constant 0 : index
    %c0_3 = arith.constant 0 : index
    %2 = vector.load %arg1[%c0_1, %c0_2, %c0_3] : memref<1x16x16xf32, #tpu.memory_space<vmem>>, vector<1x16x16xf32>
    %3 = vector.shape_cast %2 : vector<1x16x16xf32> to vector<16x16xf32>
    %c1 = arith.constant 1 : index
    %c1_4 = arith.constant 1 : index
    %4 = vector.load %arg12[%c1, %c1_4] : memref<18x18xf32, #tpu.memory_space<vmem>>, vector<16x16xf32>
    tpu.vector_store %arg12[%c1, %c1_4], %3 {strides = array<i32>} : memref<18x18xf32, #tpu.memory_space<vmem>>, vector<16x16xf32>,
    %c0_5 = arith.constant 0 : index
    %c0_6 = arith.constant 0 : index
    %5 = vector.load %arg12[%c0_5, %c0_6] : memref<18x18xf32, #tpu.memory_space<vmem>>, vector<16x18xf32>
    %c0_7 = arith.constant 0 : index
    %c0_8 = arith.constant 0 : index
    %6 = vector.load %arg2[%c0_7, %c0_8] : memref<54x96xf32, #tpu.memory_space<vmem>>, vector<18x96xf32>
    %cst_9 = arith.constant dense<0.000000e+00> : vector<16x96xf32>
    %7 = tpu.matmul %5, %6, %cst_9 {dimension_numbers = #tpu.dot_dimension_numbers<[1], [0], [0], [1], [0, 0, 1, 1], [], []>} : vector<16x18xf32>, vector<18x96xf32>, vector<16x96xf32> -> vector<16x96xf32>
    %c1_10 = arith.constant 1 : index
    %c0_11 = arith.constant 0 : index
    %8 = vector.load %arg12[%c1_10, %c0_11] : memref<18x18xf32, #tpu.memory_space<vmem>>, vector<16x18xf32>
    %c18 = arith.constant 18 : index
    %c0_12 = arith.constant 0 : index
    %9 = vector.load %arg2[%c18, %c0_12] : memref<54x96xf32, #tpu.memory_space<vmem>>, vector<18x96xf32>
    %cst_13 = arith.constant dense<0.000000e+00> : vector<16x96xf32>
    %10 = tpu.matmul %8, %9, %cst_13 {dimension_numbers = #tpu.dot_dimension_numbers<[1], [0], [0], [1], [0, 0, 1, 1], [], []>} : vector<16x18xf32>, vector<18x96xf32>, vector<16x96xf32> -> vector<16x96xf32>
    %11 = arith.addf %7, %10 : vector<16x96xf32>
    %c2 = arith.constant 2 : index
    %c0_14 = arith.constant 0 : index
    %12 = vector.load %arg12[%c2, %c0_14] : memref<18x18xf32, #tpu.memory_space<vmem>>, vector<16x18xf32>
    %c36 = arith.constant 36 : index
    %c0_15 = arith.constant 0 : index
    %13 = vector.load %arg2[%c36, %c0_15] : memref<54x96xf32, #tpu.memory_space<vmem>>, vector<18x96xf32>
    %cst_16 = arith.constant dense<0.000000e+00> : vector<16x96xf32>
    %14 = tpu.matmul %12, %13, %cst_16 {dimension_numbers = #tpu.dot_dimension_numbers<[1], [0], [0], [1], [0, 0, 1, 1], [], []>} : vector<16x18xf32>, vector<18x96xf32>, vector<16x96xf32> -> vector<16x96xf32>
    %15 = arith.addf %11, %14 : vector<16x96xf32>
    %cst_17 = arith.constant 0.000000e+00 : f32
    %16 = vector.broadcast %cst_17 : f32 to vector<16x96xf32>
    %17 = arith.maximumf %15, %16 : vector<16x96xf32>
    %18 = vector.extract_strided_slice %17 {offsets = [0, 0], sizes = [16, 48], strides = [1, 1]} : vector<16x96xf32> to vector<16x48xf32>
    %19 = vector.extract_strided_slice %17 {offsets = [0, 48], sizes = [16, 48], strides = [1, 1]} : vector<16x96xf32> to vector<16x48xf32>
    %20 = arith.maximumf %18, %19 : vector<16x48xf32>
    %c0_18 = arith.constant 0 : index
    %c0_19 = arith.constant 0 : index
    %21 = vector.load %arg13[%c0_18, %c0_19] : memref<16x48xf32, #tpu.memory_space<vmem>>, vector<16x48xf32>
    tpu.vector_store %arg13[%c0_18, %c0_19], %20 {strides = array<i32>} : memref<16x48xf32, #tpu.memory_space<vmem>>, vector<16x48xf32>,
    %c0_20 = arith.constant 0 : index
    %c0_21 = arith.constant 0 : index
    %22 = tpu.strided_load %arg13[%c0_20, %c0_21] {strides = array<i32: 2, 1>} : memref<16x48xf32, #tpu.memory_space<vmem>>, vector<8x48xf32>
    %c1_22 = arith.constant 1 : index
    %c0_23 = arith.constant 0 : index
    %23 = tpu.strided_load %arg13[%c1_22, %c0_23] {strides = array<i32: 2, 1>} : memref<16x48xf32, #tpu.memory_space<vmem>>, vector<8x48xf32>
    %24 = arith.maximumf %22, %23 : vector<8x48xf32>
    %cst_24 = arith.constant 0.000000e+00 : f32
    %25 = vector.broadcast %cst_24 : f32 to vector<10x60xf32>
    %c0_25 = arith.constant 0 : index
    %c0_26 = arith.constant 0 : index
    %26 = vector.load %arg14[%c0_25, %c0_26] : memref<10x60xf32, #tpu.memory_space<vmem>>, vector<10x60xf32>
    tpu.vector_store %arg14[%c0_25, %c0_26], %25 {strides = array<i32>} : memref<10x60xf32, #tpu.memory_space<vmem>>, vector<10x60xf32>,
    %c1_27 = arith.constant 1 : index
    %c6 = arith.constant 6 : index
    %27 = vector.load %arg14[%c1_27, %c6] : memref<10x60xf32, #tpu.memory_space<vmem>>, vector<8x48xf32>
    tpu.vector_store %arg14[%c1_27, %c6], %24 {strides = array<i32>} : memref<10x60xf32, #tpu.memory_space<vmem>>, vector<8x48xf32>,
    %c0_28 = arith.constant 0 : index
    %c0_29 = arith.constant 0 : index
    %28 = vector.load %arg14[%c0_28, %c0_29] : memref<10x60xf32, #tpu.memory_space<vmem>>, vector<8x60xf32>
    %c0_30 = arith.constant 0 : index
    %c0_31 = arith.constant 0 : index
    %29 = vector.load %arg3[%c0_30, %c0_31] : memref<180x128xf32, #tpu.memory_space<vmem>>, vector<60x128xf32>
    %cst_32 = arith.constant dense<0.000000e+00> : vector<8x128xf32>
    %30 = tpu.matmul %28, %29, %cst_32 {dimension_numbers = #tpu.dot_dimension_numbers<[1], [0], [0], [1], [0, 0, 1, 1], [], []>} : vector<8x60xf32>, vector<60x128xf32>, vector<8x128xf32> -> vector<8x128xf32>
    %c1_33 = arith.constant 1 : index
    %c0_34 = arith.constant 0 : index
    %31 = vector.load %arg14[%c1_33, %c0_34] : memref<10x60xf32, #tpu.memory_space<vmem>>, vector<8x60xf32>
    %c60 = arith.constant 60 : index
    %c0_35 = arith.constant 0 : index
    %32 = vector.load %arg3[%c60, %c0_35] : memref<180x128xf32, #tpu.memory_space<vmem>>, vector<60x128xf32>
    %cst_36 = arith.constant dense<0.000000e+00> : vector<8x128xf32>
    %33 = tpu.matmul %31, %32, %cst_36 {dimension_numbers = #tpu.dot_dimension_numbers<[1], [0], [0], [1], [0, 0, 1, 1], [], []>} : vector<8x60xf32>, vector<60x128xf32>, vector<8x128xf32> -> vector<8x128xf32>
    %34 = arith.addf %30, %33 : vector<8x128xf32>
    %c2_37 = arith.constant 2 : index
    %c0_38 = arith.constant 0 : index
    %35 = vector.load %arg14[%c2_37, %c0_38] : memref<10x60xf32, #tpu.memory_space<vmem>>, vector<8x60xf32>
    %c120 = arith.constant 120 : index
    %c0_39 = arith.constant 0 : index
    %36 = vector.load %arg3[%c120, %c0_39] : memref<180x128xf32, #tpu.memory_space<vmem>>, vector<60x128xf32>
    %cst_40 = arith.constant dense<0.000000e+00> : vector<8x128xf32>
    %37 = tpu.matmul %35, %36, %cst_40 {dimension_numbers = #tpu.dot_dimension_numbers<[1], [0], [0], [1], [0, 0, 1, 1], [], []>} : vector<8x60xf32>, vector<60x128xf32>, vector<8x128xf32> -> vector<8x128xf32>
    %38 = arith.addf %34, %37 : vector<8x128xf32>
    %cst_41 = arith.constant 0.000000e+00 : f32
    %39 = vector.broadcast %cst_41 : f32 to vector<8x128xf32>
    %40 = arith.maximumf %38, %39 : vector<8x128xf32>
    %41 = vector.extract_strided_slice %40 {offsets = [0, 0], sizes = [8, 64], strides = [1, 1]} : vector<8x128xf32> to vector<8x64xf32>
    %42 = vector.extract_strided_slice %40 {offsets = [0, 64], sizes = [8, 64], strides = [1, 1]} : vector<8x128xf32> to vector<8x64xf32>
    %43 = arith.maximumf %41, %42 : vector<8x64xf32>
    %c0_42 = arith.constant 0 : index
    %c0_43 = arith.constant 0 : index
    %44 = vector.load %arg15[%c0_42, %c0_43] : memref<8x64xf32, #tpu.memory_space<vmem>>, vector<8x64xf32>
    tpu.vector_store %arg15[%c0_42, %c0_43], %43 {strides = array<i32>} : memref<8x64xf32, #tpu.memory_space<vmem>>, vector<8x64xf32>,
    %c0_44 = arith.constant 0 : index
    %c0_45 = arith.constant 0 : index
    %45 = tpu.strided_load %arg15[%c0_44, %c0_45] {strides = array<i32: 2, 1>} : memref<8x64xf32, #tpu.memory_space<vmem>>, vector<4x64xf32>
    %c1_46 = arith.constant 1 : index
    %c0_47 = arith.constant 0 : index
    %46 = tpu.strided_load %arg15[%c1_46, %c0_47] {strides = array<i32: 2, 1>} : memref<8x64xf32, #tpu.memory_space<vmem>>, vector<4x64xf32>
    %47 = arith.maximumf %45, %46 : vector<4x64xf32>
    %cst_48 = arith.constant 0.000000e+00 : f32
    %48 = vector.broadcast %cst_48 : f32 to vector<6x96xf32>
    %c0_49 = arith.constant 0 : index
    %c0_50 = arith.constant 0 : index
    %49 = vector.load %arg16[%c0_49, %c0_50] : memref<6x96xf32, #tpu.memory_space<vmem>>, vector<6x96xf32>
    tpu.vector_store %arg16[%c0_49, %c0_50], %48 {strides = array<i32>} : memref<6x96xf32, #tpu.memory_space<vmem>>, vector<6x96xf32>,
    %c1_51 = arith.constant 1 : index
    %c16 = arith.constant 16 : index
    %50 = vector.load %arg16[%c1_51, %c16] : memref<6x96xf32, #tpu.memory_space<vmem>>, vector<4x64xf32>
    tpu.vector_store %arg16[%c1_51, %c16], %47 {strides = array<i32>} : memref<6x96xf32, #tpu.memory_space<vmem>>, vector<4x64xf32>,
    %c0_52 = arith.constant 0 : index
    %c0_53 = arith.constant 0 : index
    %51 = vector.load %arg16[%c0_52, %c0_53] : memref<6x96xf32, #tpu.memory_space<vmem>>, vector<4x96xf32>
    %c0_54 = arith.constant 0 : index
    %c0_55 = arith.constant 0 : index
    %52 = vector.load %arg4[%c0_54, %c0_55] : memref<288x64xf32, #tpu.memory_space<vmem>>, vector<96x64xf32>
    %cst_56 = arith.constant dense<0.000000e+00> : vector<4x64xf32>
    %53 = tpu.matmul %51, %52, %cst_56 {dimension_numbers = #tpu.dot_dimension_numbers<[1], [0], [0], [1], [0, 0, 1, 1], [], []>} : vector<4x96xf32>, vector<96x64xf32>, vector<4x64xf32> -> vector<4x64xf32>
    %c1_57 = arith.constant 1 : index
    %c0_58 = arith.constant 0 : index
    %54 = vector.load %arg16[%c1_57, %c0_58] : memref<6x96xf32, #tpu.memory_space<vmem>>, vector<4x96xf32>
    %c96 = arith.constant 96 : index
    %c0_59 = arith.constant 0 : index
    %55 = vector.load %arg4[%c96, %c0_59] : memref<288x64xf32, #tpu.memory_space<vmem>>, vector<96x64xf32>
    %cst_60 = arith.constant dense<0.000000e+00> : vector<4x64xf32>
    %56 = tpu.matmul %54, %55, %cst_60 {dimension_numbers = #tpu.dot_dimension_numbers<[1], [0], [0], [1], [0, 0, 1, 1], [], []>} : vector<4x96xf32>, vector<96x64xf32>, vector<4x64xf32> -> vector<4x64xf32>
    %57 = arith.addf %53, %56 : vector<4x64xf32>
    %c2_61 = arith.constant 2 : index
    %c0_62 = arith.constant 0 : index
    %58 = vector.load %arg16[%c2_61, %c0_62] : memref<6x96xf32, #tpu.memory_space<vmem>>, vector<4x96xf32>
    %c192 = arith.constant 192 : index
    %c0_63 = arith.constant 0 : index
    %59 = vector.load %arg4[%c192, %c0_63] : memref<288x64xf32, #tpu.memory_space<vmem>>, vector<96x64xf32>
    %cst_64 = arith.constant dense<0.000000e+00> : vector<4x64xf32>
    %60 = tpu.matmul %58, %59, %cst_64 {dimension_numbers = #tpu.dot_dimension_numbers<[1], [0], [0], [1], [0, 0, 1, 1], [], []>} : vector<4x96xf32>, vector<96x64xf32>, vector<4x64xf32> -> vector<4x64xf32>
    %61 = arith.addf %57, %60 : vector<4x64xf32>
    %cst_65 = arith.constant 0.000000e+00 : f32
    %62 = vector.broadcast %cst_65 : f32 to vector<4x64xf32>
    %63 = arith.maximumf %61, %62 : vector<4x64xf32>
    %cst_66 = arith.constant 0.000000e+00 : f32
    %64 = vector.broadcast %cst_66 : f32 to vector<11x176xf32>
    %c0_67 = arith.constant 0 : index
    %c0_68 = arith.constant 0 : index
    %65 = vector.load %arg17[%c0_67, %c0_68] : memref<11x176xf32, #tpu.memory_space<vmem>>, vector<11x176xf32>
    tpu.vector_store %arg17[%c0_67, %c0_68], %64 {strides = array<i32>} : memref<11x176xf32, #tpu.memory_space<vmem>>, vector<11x176xf32>,
    %c0_69 = arith.constant 0 : index
    %c0_70 = arith.constant 0 : index
    %66 = vector.load %arg6[%c0_69, %c0_70] : memref<64x128xf32, #tpu.memory_space<vmem>>, vector<64x128xf32>
    %cst_71 = arith.constant dense<0.000000e+00> : vector<4x128xf32>
    %67 = tpu.matmul %63, %66, %cst_71 {dimension_numbers = #tpu.dot_dimension_numbers<[1], [0], [0], [1], [0, 0, 1, 1], [], []>} : vector<4x64xf32>, vector<64x128xf32>, vector<4x128xf32> -> vector<4x128xf32>
    %68 = vector.extract_strided_slice %67 {offsets = [0, 0], sizes = [1, 128], strides = [1, 1]} : vector<4x128xf32> to vector<1x128xf32>
    %c1_72 = arith.constant 1 : index
    %c16_73 = arith.constant 16 : index
    %69 = vector.load %arg17[%c1_72, %c16_73] : memref<11x176xf32, #tpu.memory_space<vmem>>, vector<1x128xf32>
    tpu.vector_store %arg17[%c1_72, %c16_73], %68 {strides = array<i32>} : memref<11x176xf32, #tpu.memory_space<vmem>>, vector<1x128xf32>,
    %70 = vector.extract_strided_slice %67 {offsets = [1, 0], sizes = [1, 128], strides = [1, 1]} : vector<4x128xf32> to vector<1x128xf32>
    %c3 = arith.constant 3 : index
    %c16_74 = arith.constant 16 : index
    %71 = vector.load %arg17[%c3, %c16_74] : memref<11x176xf32, #tpu.memory_space<vmem>>, vector<1x128xf32>
    tpu.vector_store %arg17[%c3, %c16_74], %70 {strides = array<i32>} : memref<11x176xf32, #tpu.memory_space<vmem>>, vector<1x128xf32>,
    %72 = vector.extract_strided_slice %67 {offsets = [2, 0], sizes = [1, 128], strides = [1, 1]} : vector<4x128xf32> to vector<1x128xf32>
    %c5 = arith.constant 5 : index
    %c16_75 = arith.constant 16 : index
    %73 = vector.load %arg17[%c5, %c16_75] : memref<11x176xf32, #tpu.memory_space<vmem>>, vector<1x128xf32>
    tpu.vector_store %arg17[%c5, %c16_75], %72 {strides = array<i32>} : memref<11x176xf32, #tpu.memory_space<vmem>>, vector<1x128xf32>,
    %74 = vector.extract_strided_slice %67 {offsets = [3, 0], sizes = [1, 128], strides = [1, 1]} : vector<4x128xf32> to vector<1x128xf32>
    %c7 = arith.constant 7 : index
    %c16_76 = arith.constant 16 : index
    %75 = vector.load %arg17[%c7, %c16_76] : memref<11x176xf32, #tpu.memory_space<vmem>>, vector<1x128xf32>
    tpu.vector_store %arg17[%c7, %c16_76], %74 {strides = array<i32>} : memref<11x176xf32, #tpu.memory_space<vmem>>, vector<1x128xf32>,
    %c0_77 = arith.constant 0 : index
    %c0_78 = arith.constant 0 : index
    %76 = vector.load %arg7[%c0_77, %c0_78] : memref<64x128xf32, #tpu.memory_space<vmem>>, vector<64x128xf32>
    %cst_79 = arith.constant dense<0.000000e+00> : vector<4x128xf32>
    %77 = tpu.matmul %63, %76, %cst_79 {dimension_numbers = #tpu.dot_dimension_numbers<[1], [0], [0], [1], [0, 0, 1, 1], [], []>} : vector<4x64xf32>, vector<64x128xf32>, vector<4x128xf32> -> vector<4x128xf32>
    %78 = vector.extract_strided_slice %77 {offsets = [0, 0], sizes = [1, 128], strides = [1, 1]} : vector<4x128xf32> to vector<1x128xf32>
    %c2_80 = arith.constant 2 : index
    %c16_81 = arith.constant 16 : index
    %79 = vector.load %arg17[%c2_80, %c16_81] : memref<11x176xf32, #tpu.memory_space<vmem>>, vector<1x128xf32>
    tpu.vector_store %arg17[%c2_80, %c16_81], %78 {strides = array<i32>} : memref<11x176xf32, #tpu.memory_space<vmem>>, vector<1x128xf32>,
    %80 = vector.extract_strided_slice %77 {offsets = [1, 0], sizes = [1, 128], strides = [1, 1]} : vector<4x128xf32> to vector<1x128xf32>
    %c4 = arith.constant 4 : index
    %c16_82 = arith.constant 16 : index
    %81 = vector.load %arg17[%c4, %c16_82] : memref<11x176xf32, #tpu.memory_space<vmem>>, vector<1x128xf32>
    tpu.vector_store %arg17[%c4, %c16_82], %80 {strides = array<i32>} : memref<11x176xf32, #tpu.memory_space<vmem>>, vector<1x128xf32>,
    %82 = vector.extract_strided_slice %77 {offsets = [2, 0], sizes = [1, 128], strides = [1, 1]} : vector<4x128xf32> to vector<1x128xf32>
    %c6_83 = arith.constant 6 : index
    %c16_84 = arith.constant 16 : index
    %83 = vector.load %arg17[%c6_83, %c16_84] : memref<11x176xf32, #tpu.memory_space<vmem>>, vector<1x128xf32>
    tpu.vector_store %arg17[%c6_83, %c16_84], %82 {strides = array<i32>} : memref<11x176xf32, #tpu.memory_space<vmem>>, vector<1x128xf32>,
    %84 = vector.extract_strided_slice %77 {offsets = [3, 0], sizes = [1, 128], strides = [1, 1]} : vector<4x128xf32> to vector<1x128xf32>
    %c8 = arith.constant 8 : index
    %c16_85 = arith.constant 16 : index
    %85 = vector.load %arg17[%c8, %c16_85] : memref<11x176xf32, #tpu.memory_space<vmem>>, vector<1x128xf32>
    tpu.vector_store %arg17[%c8, %c16_85], %84 {strides = array<i32>} : memref<11x176xf32, #tpu.memory_space<vmem>>, vector<1x128xf32>,
    %c0_86 = arith.constant 0 : index
    %c0_87 = arith.constant 0 : index
    %86 = vector.load %arg17[%c0_86, %c0_87] : memref<11x176xf32, #tpu.memory_space<vmem>>, vector<9x176xf32>
    %c0_88 = arith.constant 0 : index
    %c0_89 = arith.constant 0 : index
    %87 = vector.load %arg5[%c0_88, %c0_89] : memref<528x54xf32, #tpu.memory_space<vmem>>, vector<176x54xf32>
    %cst_90 = arith.constant dense<0.000000e+00> : vector<9x54xf32>
    %88 = tpu.matmul %86, %87, %cst_90 {dimension_numbers = #tpu.dot_dimension_numbers<[1], [0], [0], [1], [0, 0, 1, 1], [], []>} : vector<9x176xf32>, vector<176x54xf32>, vector<9x54xf32> -> vector<9x54xf32>
    %c1_91 = arith.constant 1 : index
    %c0_92 = arith.constant 0 : index
    %89 = vector.load %arg17[%c1_91, %c0_92] : memref<11x176xf32, #tpu.memory_space<vmem>>, vector<9x176xf32>
    %c176 = arith.constant 176 : index
    %c0_93 = arith.constant 0 : index
    %90 = vector.load %arg5[%c176, %c0_93] : memref<528x54xf32, #tpu.memory_space<vmem>>, vector<176x54xf32>
    %cst_94 = arith.constant dense<0.000000e+00> : vector<9x54xf32>
    %91 = tpu.matmul %89, %90, %cst_94 {dimension_numbers = #tpu.dot_dimension_numbers<[1], [0], [0], [1], [0, 0, 1, 1], [], []>} : vector<9x176xf32>, vector<176x54xf32>, vector<9x54xf32> -> vector<9x54xf32>
    %92 = arith.addf %88, %91 : vector<9x54xf32>
    %c2_95 = arith.constant 2 : index
    %c0_96 = arith.constant 0 : index
    %93 = vector.load %arg17[%c2_95, %c0_96] : memref<11x176xf32, #tpu.memory_space<vmem>>, vector<9x176xf32>
    %c352 = arith.constant 352 : index
    %c0_97 = arith.constant 0 : index
    %94 = vector.load %arg5[%c352, %c0_97] : memref<528x54xf32, #tpu.memory_space<vmem>>, vector<176x54xf32>
    %cst_98 = arith.constant dense<0.000000e+00> : vector<9x54xf32>
    %95 = tpu.matmul %93, %94, %cst_98 {dimension_numbers = #tpu.dot_dimension_numbers<[1], [0], [0], [1], [0, 0, 1, 1], [], []>} : vector<9x176xf32>, vector<176x54xf32>, vector<9x54xf32> -> vector<9x54xf32>
    %96 = arith.addf %92, %95 : vector<9x54xf32>
    %cst_99 = arith.constant 0.000000e+00 : f32
    %97 = vector.broadcast %cst_99 : f32 to vector<9x54xf32>
    %98 = arith.maximumf %96, %97 : vector<9x54xf32>
    %c0_100 = arith.constant 0 : index
    %c0_101 = arith.constant 0 : index
    %99 = vector.load %arg8[%c0_100, %c0_101] : memref<54x108xf32, #tpu.memory_space<vmem>>, vector<54x108xf32>
    %cst_102 = arith.constant dense<0.000000e+00> : vector<9x108xf32>
    %100 = tpu.matmul %98, %99, %cst_102 {dimension_numbers = #tpu.dot_dimension_numbers<[1], [0], [0], [1], [0, 0, 1, 1], [], []>} : vector<9x54xf32>, vector<54x108xf32>, vector<9x108xf32> -> vector<9x108xf32>
    %101 = vector.extract_strided_slice %100 {offsets = [0, 0], sizes = [1, 108], strides = [1, 1]} : vector<9x108xf32> to vector<1x108xf32>
    %c0_103 = arith.constant 0 : index
    %c0_104 = arith.constant 0 : index
    %102 = vector.load %arg18[%c0_103, %c0_104] : memref<18x108xf32, #tpu.memory_space<vmem>>, vector<1x108xf32>
    tpu.vector_store %arg18[%c0_103, %c0_104], %101 {strides = array<i32>} : memref<18x108xf32, #tpu.memory_space<vmem>>, vector<1x108xf32>,
    %103 = vector.extract_strided_slice %100 {offsets = [1, 0], sizes = [1, 108], strides = [1, 1]} : vector<9x108xf32> to vector<1x108xf32>
    %c2_105 = arith.constant 2 : index
    %c0_106 = arith.constant 0 : index
    %104 = vector.load %arg18[%c2_105, %c0_106] : memref<18x108xf32, #tpu.memory_space<vmem>>, vector<1x108xf32>
    tpu.vector_store %arg18[%c2_105, %c0_106], %103 {strides = array<i32>} : memref<18x108xf32, #tpu.memory_space<vmem>>, vector<1x108xf32>,
    %105 = vector.extract_strided_slice %100 {offsets = [2, 0], sizes = [1, 108], strides = [1, 1]} : vector<9x108xf32> to vector<1x108xf32>
    %c4_107 = arith.constant 4 : index
    %c0_108 = arith.constant 0 : index
    %106 = vector.load %arg18[%c4_107, %c0_108] : memref<18x108xf32, #tpu.memory_space<vmem>>, vector<1x108xf32>
    tpu.vector_store %arg18[%c4_107, %c0_108], %105 {strides = array<i32>} : memref<18x108xf32, #tpu.memory_space<vmem>>, vector<1x108xf32>,
    %107 = vector.extract_strided_slice %100 {offsets = [3, 0], sizes = [1, 108], strides = [1, 1]} : vector<9x108xf32> to vector<1x108xf32>
    %c6_109 = arith.constant 6 : index
    %c0_110 = arith.constant 0 : index
    %108 = vector.load %arg18[%c6_109, %c0_110] : memref<18x108xf32, #tpu.memory_space<vmem>>, vector<1x108xf32>
    tpu.vector_store %arg18[%c6_109, %c0_110], %107 {strides = array<i32>} : memref<18x108xf32, #tpu.memory_space<vmem>>, vector<1x108xf32>,
    %109 = vector.extract_strided_slice %100 {offsets = [4, 0], sizes = [1, 108], strides = [1, 1]} : vector<9x108xf32> to vector<1x108xf32>
    %c8_111 = arith.constant 8 : index
    %c0_112 = arith.constant 0 : index
    %110 = vector.load %arg18[%c8_111, %c0_112] : memref<18x108xf32, #tpu.memory_space<vmem>>, vector<1x108xf32>
    tpu.vector_store %arg18[%c8_111, %c0_112], %109 {strides = array<i32>} : memref<18x108xf32, #tpu.memory_space<vmem>>, vector<1x108xf32>,
    %111 = vector.extract_strided_slice %100 {offsets = [5, 0], sizes = [1, 108], strides = [1, 1]} : vector<9x108xf32> to vector<1x108xf32>
    %c10 = arith.constant 10 : index
    %c0_113 = arith.constant 0 : index
    %112 = vector.load %arg18[%c10, %c0_113] : memref<18x108xf32, #tpu.memory_space<vmem>>, vector<1x108xf32>
    tpu.vector_store %arg18[%c10, %c0_113], %111 {strides = array<i32>} : memref<18x108xf32, #tpu.memory_space<vmem>>, vector<1x108xf32>,
    %113 = vector.extract_strided_slice %100 {offsets = [6, 0], sizes = [1, 108], strides = [1, 1]} : vector<9x108xf32> to vector<1x108xf32>
    %c12 = arith.constant 12 : index
    %c0_114 = arith.constant 0 : index
    %114 = vector.load %arg18[%c12, %c0_114] : memref<18x108xf32, #tpu.memory_space<vmem>>, vector<1x108xf32>
    tpu.vector_store %arg18[%c12, %c0_114], %113 {strides = array<i32>} : memref<18x108xf32, #tpu.memory_space<vmem>>, vector<1x108xf32>,
    %115 = vector.extract_strided_slice %100 {offsets = [7, 0], sizes = [1, 108], strides = [1, 1]} : vector<9x108xf32> to vector<1x108xf32>
    %c14 = arith.constant 14 : index
    %c0_115 = arith.constant 0 : index
    %116 = vector.load %arg18[%c14, %c0_115] : memref<18x108xf32, #tpu.memory_space<vmem>>, vector<1x108xf32>
    tpu.vector_store %arg18[%c14, %c0_115], %115 {strides = array<i32>} : memref<18x108xf32, #tpu.memory_space<vmem>>, vector<1x108xf32>,
    %117 = vector.extract_strided_slice %100 {offsets = [8, 0], sizes = [1, 108], strides = [1, 1]} : vector<9x108xf32> to vector<1x108xf32>
    %c16_116 = arith.constant 16 : index
    %c0_117 = arith.constant 0 : index
    %118 = vector.load %arg18[%c16_116, %c0_117] : memref<18x108xf32, #tpu.memory_space<vmem>>, vector<1x108xf32>
    tpu.vector_store %arg18[%c16_116, %c0_117], %117 {strides = array<i32>} : memref<18x108xf32, #tpu.memory_space<vmem>>, vector<1x108xf32>,
    %c0_118 = arith.constant 0 : index
    %c0_119 = arith.constant 0 : index
    %119 = vector.load %arg9[%c0_118, %c0_119] : memref<54x108xf32, #tpu.memory_space<vmem>>, vector<54x108xf32>
    %cst_120 = arith.constant dense<0.000000e+00> : vector<9x108xf32>
    %120 = tpu.matmul %98, %119, %cst_120 {dimension_numbers = #tpu.dot_dimension_numbers<[1], [0], [0], [1], [0, 0, 1, 1], [], []>} : vector<9x54xf32>, vector<54x108xf32>, vector<9x108xf32> -> vector<9x108xf32>
    %121 = vector.extract_strided_slice %120 {offsets = [0, 0], sizes = [1, 108], strides = [1, 1]} : vector<9x108xf32> to vector<1x108xf32>
    %c1_121 = arith.constant 1 : index
    %c0_122 = arith.constant 0 : index
    %122 = vector.load %arg18[%c1_121, %c0_122] : memref<18x108xf32, #tpu.memory_space<vmem>>, vector<1x108xf32>
    tpu.vector_store %arg18[%c1_121, %c0_122], %121 {strides = array<i32>} : memref<18x108xf32, #tpu.memory_space<vmem>>, vector<1x108xf32>,
    %123 = vector.extract_strided_slice %120 {offsets = [1, 0], sizes = [1, 108], strides = [1, 1]} : vector<9x108xf32> to vector<1x108xf32>
    %c3_123 = arith.constant 3 : index
    %c0_124 = arith.constant 0 : index
    %124 = vector.load %arg18[%c3_123, %c0_124] : memref<18x108xf32, #tpu.memory_space<vmem>>, vector<1x108xf32>
    tpu.vector_store %arg18[%c3_123, %c0_124], %123 {strides = array<i32>} : memref<18x108xf32, #tpu.memory_space<vmem>>, vector<1x108xf32>,
    %125 = vector.extract_strided_slice %120 {offsets = [2, 0], sizes = [1, 108], strides = [1, 1]} : vector<9x108xf32> to vector<1x108xf32>
    %c5_125 = arith.constant 5 : index
    %c0_126 = arith.constant 0 : index
    %126 = vector.load %arg18[%c5_125, %c0_126] : memref<18x108xf32, #tpu.memory_space<vmem>>, vector<1x108xf32>
    tpu.vector_store %arg18[%c5_125, %c0_126], %125 {strides = array<i32>} : memref<18x108xf32, #tpu.memory_space<vmem>>, vector<1x108xf32>,
    %127 = vector.extract_strided_slice %120 {offsets = [3, 0], sizes = [1, 108], strides = [1, 1]} : vector<9x108xf32> to vector<1x108xf32>
    %c7_127 = arith.constant 7 : index
    %c0_128 = arith.constant 0 : index
    %128 = vector.load %arg18[%c7_127, %c0_128] : memref<18x108xf32, #tpu.memory_space<vmem>>, vector<1x108xf32>
    tpu.vector_store %arg18[%c7_127, %c0_128], %127 {strides = array<i32>} : memref<18x108xf32, #tpu.memory_space<vmem>>, vector<1x108xf32>,
    %129 = vector.extract_strided_slice %120 {offsets = [4, 0], sizes = [1, 108], strides = [1, 1]} : vector<9x108xf32> to vector<1x108xf32>
    %c9 = arith.constant 9 : index
    %c0_129 = arith.constant 0 : index
    %130 = vector.load %arg18[%c9, %c0_129] : memref<18x108xf32, #tpu.memory_space<vmem>>, vector<1x108xf32>
    tpu.vector_store %arg18[%c9, %c0_129], %129 {strides = array<i32>} : memref<18x108xf32, #tpu.memory_space<vmem>>, vector<1x108xf32>,
    %131 = vector.extract_strided_slice %120 {offsets = [5, 0], sizes = [1, 108], strides = [1, 1]} : vector<9x108xf32> to vector<1x108xf32>
    %c11 = arith.constant 11 : index
    %c0_130 = arith.constant 0 : index
    %132 = vector.load %arg18[%c11, %c0_130] : memref<18x108xf32, #tpu.memory_space<vmem>>, vector<1x108xf32>
    tpu.vector_store %arg18[%c11, %c0_130], %131 {strides = array<i32>} : memref<18x108xf32, #tpu.memory_space<vmem>>, vector<1x108xf32>,
    %133 = vector.extract_strided_slice %120 {offsets = [6, 0], sizes = [1, 108], strides = [1, 1]} : vector<9x108xf32> to vector<1x108xf32>
    %c13 = arith.constant 13 : index
    %c0_131 = arith.constant 0 : index
    %134 = vector.load %arg18[%c13, %c0_131] : memref<18x108xf32, #tpu.memory_space<vmem>>, vector<1x108xf32>
    tpu.vector_store %arg18[%c13, %c0_131], %133 {strides = array<i32>} : memref<18x108xf32, #tpu.memory_space<vmem>>, vector<1x108xf32>,
    %135 = vector.extract_strided_slice %120 {offsets = [7, 0], sizes = [1, 108], strides = [1, 1]} : vector<9x108xf32> to vector<1x108xf32>
    %c15 = arith.constant 15 : index
    %c0_132 = arith.constant 0 : index
    %136 = vector.load %arg18[%c15, %c0_132] : memref<18x108xf32, #tpu.memory_space<vmem>>, vector<1x108xf32>
    tpu.vector_store %arg18[%c15, %c0_132], %135 {strides = array<i32>} : memref<18x108xf32, #tpu.memory_space<vmem>>, vector<1x108xf32>,
    %137 = vector.extract_strided_slice %120 {offsets = [8, 0], sizes = [1, 108], strides = [1, 1]} : vector<9x108xf32> to vector<1x108xf32>
    %c17 = arith.constant 17 : index
    %c0_133 = arith.constant 0 : index
    %138 = vector.load %arg18[%c17, %c0_133] : memref<18x108xf32, #tpu.memory_space<vmem>>, vector<1x108xf32>
    tpu.vector_store %arg18[%c17, %c0_133], %137 {strides = array<i32>} : memref<18x108xf32, #tpu.memory_space<vmem>>, vector<1x108xf32>,
    %c0_134 = arith.constant 0 : index
    %c0_135 = arith.constant 0 : index
    %139 = vector.load %arg18[%c0_134, %c0_135] : memref<18x108xf32, #tpu.memory_space<vmem>>, vector<18x108xf32>
    %c0_136 = arith.constant 0 : index
    %c0_137 = arith.constant 0 : index
    %140 = vector.load %arg10[%c0_136, %c0_137] : memref<108x18xf32, #tpu.memory_space<vmem>>, vector<108x18xf32>
    %cst_138 = arith.constant dense<0.000000e+00> : vector<18x18xf32>
    %141 = tpu.matmul %139, %140, %cst_138 {dimension_numbers = #tpu.dot_dimension_numbers<[1], [0], [0], [1], [0, 0, 1, 1], [], []>} : vector<18x108xf32>, vector<108x18xf32>, vector<18x18xf32> -> vector<18x18xf32>
    %cst_139 = arith.constant 0.000000e+00 : f32
    %142 = vector.broadcast %cst_139 : f32 to vector<18x18xf32>
    %143 = arith.subf %142, %141 : vector<18x18xf32>
    %144 = math.exp %143 : vector<18x18xf32>
    %cst_140 = arith.constant 1.000000e+00 : f32
    %145 = vector.broadcast %cst_140 : f32 to vector<18x18xf32>
    %146 = arith.addf %145, %144 : vector<18x18xf32>
    %cst_141 = arith.constant 1.000000e+00 : f32
    %147 = vector.broadcast %cst_141 : f32 to vector<18x18xf32>
    %148 = arith.divf %147, %146 : vector<18x18xf32>
    %c0_142 = arith.constant 0 : index
    %c0_143 = arith.constant 0 : index
    %c0_144 = arith.constant 0 : index
    %149 = vector.load %arg11[%c0_142, %c0_143, %c0_144] : memref<1x18x18xf32, #tpu.memory_space<vmem>>, vector<1x18x18xf32>
    %150 = vector.shape_cast %149 : vector<1x18x18xf32> to vector<18x18xf32>
    %151 = vector.shape_cast %148 : vector<18x18xf32> to vector<1x18x18xf32>
    tpu.vector_store %arg11[%c0_142, %c0_143, %c0_144], %151 {strides = array<i32>} : memref<1x18x18xf32, #tpu.memory_space<vmem>>, vector<1x18x18xf32>,
    return
  }
  func.func @transform_0(%arg0: i32) -> (i32, i32, i32) {
    %c0_i32 = arith.constant 0 : i32
    %c0_i32_0 = arith.constant 0 : i32
    %c0_i32_1 = arith.constant 0 : i32
    return %arg0, %c0_i32, %c0_i32_0 : i32, i32, i32
  }
  func.func @transform_1(%arg0: i32) -> (i32, i32) {
    %c0_i32 = arith.constant 0 : i32
    %c0_i32_0 = arith.constant 0 : i32
    %c0_i32_1 = arith.constant 0 : i32
    return %c0_i32, %c0_i32_0 : i32, i32
  }
  func.func @transform_2(%arg0: i32) -> (i32, i32) {
    %c0_i32 = arith.constant 0 : i32
    %c0_i32_0 = arith.constant 0 : i32
    %c0_i32_1 = arith.constant 0 : i32
    return %c0_i32, %c0_i32_0 : i32, i32
  }
  func.func @transform_3(%arg0: i32) -> (i32, i32) {
    %c0_i32 = arith.constant 0 : i32
    %c0_i32_0 = arith.constant 0 : i32
    %c0_i32_1 = arith.constant 0 : i32
    return %c0_i32, %c0_i32_0 : i32, i32
  }
  func.func @transform_4(%arg0: i32) -> (i32, i32) {
    %c0_i32 = arith.constant 0 : i32
    %c0_i32_0 = arith.constant 0 : i32
    %c0_i32_1 = arith.constant 0 : i32
    return %c0_i32, %c0_i32_0 : i32, i32
  }
  func.func @transform_5(%arg0: i32) -> (i32, i32) {
    %c0_i32 = arith.constant 0 : i32
    %c0_i32_0 = arith.constant 0 : i32
    %c0_i32_1 = arith.constant 0 : i32
    return %c0_i32, %c0_i32_0 : i32, i32
  }
  func.func @transform_6(%arg0: i32) -> (i32, i32) {
    %c0_i32 = arith.constant 0 : i32
    %c0_i32_0 = arith.constant 0 : i32
    %c0_i32_1 = arith.constant 0 : i32
    return %c0_i32, %c0_i32_0 : i32, i32
  }
  func.func @transform_7(%arg0: i32) -> (i32, i32) {
    %c0_i32 = arith.constant 0 : i32
    %c0_i32_0 = arith.constant 0 : i32
    %c0_i32_1 = arith.constant 0 : i32
    return %c0_i32, %c0_i32_0 : i32, i32
  }
  func.func @transform_8(%arg0: i32) -> (i32, i32) {
    %c0_i32 = arith.constant 0 : i32
    %c0_i32_0 = arith.constant 0 : i32
    %c0_i32_1 = arith.constant 0 : i32
    return %c0_i32, %c0_i32_0 : i32, i32
  }
  func.func @transform_9(%arg0: i32) -> (i32, i32) {
    %c0_i32 = arith.constant 0 : i32
    %c0_i32_0 = arith.constant 0 : i32
    %c0_i32_1 = arith.constant 0 : i32
    return %c0_i32, %c0_i32_0 : i32, i32
  }
  func.func @transform_10(%arg0: i32) -> (i32, i32, i32) {
    %c0_i32 = arith.constant 0 : i32
    %c0_i32_0 = arith.constant 0 : i32
    %c0_i32_1 = arith.constant 0 : i32
    return %arg0, %c0_i32, %c0_i32_0 : i32, i32, i32
  }
}

</mosaic_0001>

<llo_original>
// kernel: autoencoder_forward.1
$region0: #{autoencoder_forward.1}
  #allocation0 [shape = 'u32[]', space=smem, size = 0x4, offset = 0x4, fixed_abs, tag = 'smem constant byte address 0x4 - core index']
  #allocation1 [shape = 'u32[144,128]{1,0:T(1,128)}', space=vmem, size = 0x12000, scoped, tag = 'internal scratch']
  #allocation2 [shape = 'f32[18,18]{1,0:T(8,128)}', space=vmem, size = 0x3000, scoped, tag = 'scratch operand']
  #allocation3 [shape = 'f32[16,48]{1,0:T(8,128)}', space=vmem, size = 0x2000, scoped, tag = 'scratch operand']
  #allocation4 [shape = 'f32[10,60]{1,0:T(8,128)}', space=vmem, size = 0x2000, scoped, tag = 'scratch operand']
  #allocation5 [shape = 'f32[8,64]{1,0:T(8,128)}', space=vmem, size = 0x1000, scoped, tag = 'scratch operand']
  #allocation6 [shape = 'f32[6,96]{1,0:T(8,128)}', space=vmem, size = 0x1000, scoped, tag = 'scratch operand']
  #allocation7 [shape = 'f32[11,176]{1,0:T(8,128)}', space=vmem, size = 0x4000, scoped, tag = 'scratch operand']
  #allocation8 [shape = 'f32[18,108]{1,0:T(8,128)}', space=vmem, size = 0x3000, scoped, tag = 'scratch operand']
  %s0 = inlined_call_operand.vmem [shape: f32[2,16,16], index: 0, kind: input, shape index: {}]
  %s1 = inlined_call_operand.vmem [shape: f32[54,96], index: 1, kind: input, shape index: {}]
  %s2 = inlined_call_operand.vmem [shape: f32[180,128], index: 2, kind: input, shape index: {}]
  %s3 = inlined_call_operand.vmem [shape: f32[288,64], index: 3, kind: input, shape index: {}]
  %s4 = inlined_call_operand.vmem [shape: f32[528,54], index: 4, kind: input, shape index: {}]
  %s5 = inlined_call_operand.vmem [shape: f32[64,128], index: 5, kind: input, shape index: {}]
  %s6 = inlined_call_operand.vmem [shape: f32[64,128], index: 6, kind: input, shape index: {}]
  %s7 = inlined_call_operand.vmem [shape: f32[54,108], index: 7, kind: input, shape index: {}]
  %s8 = inlined_call_operand.vmem [shape: f32[54,108], index: 8, kind: input, shape index: {}]
  %s9 = inlined_call_operand.vmem [shape: f32[108,18], index: 9, kind: input, shape index: {}]
  %s10 = inlined_call_operand.vmem [shape: f32[2,18,18], index: 10, kind: output, shape index: {}]
  %s11 = sld [smem:[#allocation0]]
  $region73: #{autoencoder_forward.1} parent=0
    _
  %s13 = ssub.s32 1, %s11
  %s14 = scalar_select 0, %s13, %s11
  loop: start=0, step=1, limit=4
  $region2: #{autoencoder_forward.1} parent=0 // loop_pre_header
    _
  $region3: #{autoencoder_forward.1} parent=0 // loop_header
    %s16 = sphi 0, %s20
    %p17 = scmp.ge.s32.totalorder %s16, 4
    %s26 = sphi 0, %s28
    %s29 = sphi 0, %s26
    %s30 = sphi 0, %s29
    %s46 = sphi 0, %s30
    %s50 = sphi 0, %s50
    %s52 = sphi 0, %s50
    %s53 = sphi 0, %s52
    %s67 = sphi 0, %s53
    %s71 = sphi 0, %s71
    %s73 = sphi 0, %s71
    %s74 = sphi 0, %s73
    %s88 = sphi 0, %s74
    %s92 = sphi 0, %s92
    %s94 = sphi 0, %s92
    %s95 = sphi 0, %s94
    %s109 = sphi 0, %s95
    %s113 = sphi 0, %s113
    %s115 = sphi 0, %s113
    %s116 = sphi 0, %s115
    %s130 = sphi 0, %s116
    %s134 = sphi 0, %s134
    %s136 = sphi 0, %s134
    %s137 = sphi 0, %s136
    %s151 = sphi 0, %s137
    %s155 = sphi 0, %s155
    %s157 = sphi 0, %s155
    %s158 = sphi 0, %s157
    %s172 = sphi 0, %s158
    %s176 = sphi 0, %s176
    %s178 = sphi 0, %s176
    %s179 = sphi 0, %s178
    %s193 = sphi 0, %s179
    %s197 = sphi 0, %s197
    %s199 = sphi 0, %s197
    %s200 = sphi 0, %s199
    %s214 = sphi 0, %s200
    %s218 = sphi 0, %s218
    %s220 = sphi 0, %s218
    %s221 = sphi 0, %s220
    %s235 = sphi 0, %s221
    %s241 = sphi 0, %s243
    %s244 = sphi 0, %s241
    %s245 = sphi 0, %s244
    %s261 = sphi 0, %s245
  $region4: #{autoencoder_forward.1} parent=0 // loop_header_branch
    %19 = sbr.rel (%p17) target = $region8
  $region5: #{autoencoder_forward.1} parent=0 // loop_body
    %s21 = ssub.s32 %s16, 1
    %s22 = ssub.s32 %s16, 2
    %s23 = sadd.s32 %s16, 1
    %s24 = ssub.s32 %s16, %s23
    %p25 = scmp.eq.s32.totalorder %s24, 0
    %s27 = sadd.s32 %s26, 1
    %s28 = scalar_select %p25, %s26, %s27
    %p31 = pneg %p25
    %p32 = scmp.eq.s32.totalorder %s16, 1
    %p33 = por %p31, %p32
    %p34 = scmp.ne.s32.totalorder %s26, %s29
    %p35 = scmp.eq.s32.totalorder %s16, 0
    %p36 = por %p34, %p35
    %p37 = scmp.ne.s32.totalorder %s26, %s29
    %p38 = scmp.eq.s32.totalorder %s21, 1
    %p39 = por %p37, %p38
    %p40 = scmp.ne.s32.totalorder %s29, %s30
    %p41 = scmp.eq.s32.totalorder %s21, 0
    %p42 = por %p40, %p41
    %p43 = scmp.ne.s32.totalorder %s29, %s30
    %p44 = scmp.eq.s32.totalorder %s22, 1
    %p45 = por %p43, %p44
    %p47 = scmp.ne.s32.totalorder %s30, %s46
    %p48 = scmp.eq.s32.totalorder %s22, 0
    %p49 = por %p47, %p48
    %s51 = sadd.s32 %s50, 1
    %p54 = scmp.eq.s32.totalorder %s16, 1
    %p55 = scmp.ne.s32.totalorder %s50, %s52
    %p56 = scmp.eq.s32.totalorder %s16, 0
    %p57 = por %p55, %p56
    %p58 = scmp.ne.s32.totalorder %s50, %s52
    %p59 = scmp.eq.s32.totalorder %s21, 1
    %p60 = por %p58, %p59
    %p61 = scmp.ne.s32.totalorder %s52, %s53
    %p62 = scmp.eq.s32.totalorder %s21, 0
    %p63 = por %p61, %p62
    %p64 = scmp.ne.s32.totalorder %s52, %s53
    %p65 = scmp.eq.s32.totalorder %s22, 1
    %p66 = por %p64, %p65
    %p68 = scmp.ne.s32.totalorder %s53, %s67
    %p69 = scmp.eq.s32.totalorder %s22, 0
    %p70 = por %p68, %p69
    %s72 = sadd.s32 %s71, 1
    %p75 = scmp.eq.s32.totalorder %s16, 1
    %p76 = scmp.ne.s32.totalorder %s71, %s73
    %p77 = scmp.eq.s32.totalorder %s16, 0
    %p78 = por %p76, %p77
    %p79 = scmp.ne.s32.totalorder %s71, %s73
    %p80 = scmp.eq.s32.totalorder %s21, 1
    %p81 = por %p79, %p80
    %p82 = scmp.ne.s32.totalorder %s73, %s74
    %p83 = scmp.eq.s32.totalorder %s21, 0
    %p84 = por %p82, %p83
    %p85 = scmp.ne.s32.totalorder %s73, %s74
    %p86 = scmp.eq.s32.totalorder %s22, 1
    %p87 = por %p85, %p86
    %p89 = scmp.ne.s32.totalorder %s74, %s88
    %p90 = scmp.eq.s32.totalorder %s22, 0
    %p91 = por %p89, %p90
    %s93 = sadd.s32 %s92, 1
    %p96 = scmp.eq.s32.totalorder %s16, 1
    %p97 = scmp.ne.s32.totalorder %s92, %s94
    %p98 = scmp.eq.s32.totalorder %s16, 0
    %p99 = por %p97, %p98
    %p100 = scmp.ne.s32.totalorder %s92, %s94
    %p101 = scmp.eq.s32.totalorder %s21, 1
    %p102 = por %p100, %p101
    %p103 = scmp.ne.s32.totalorder %s94, %s95
    %p104 = scmp.eq.s32.totalorder %s21, 0
    %p105 = por %p103, %p104
    %p106 = scmp.ne.s32.totalorder %s94, %s95
    %p107 = scmp.eq.s32.totalorder %s22, 1
    %p108 = por %p106, %p107
    %p110 = scmp.ne.s32.totalorder %s95, %s109
    %p111 = scmp.eq.s32.totalorder %s22, 0
    %p112 = por %p110, %p111
    %s114 = sadd.s32 %s113, 1
    %p117 = scmp.eq.s32.totalorder %s16, 1
    %p118 = scmp.ne.s32.totalorder %s113, %s115
    %p119 = scmp.eq.s32.totalorder %s16, 0
    %p120 = por %p118, %p119
    %p121 = scmp.ne.s32.totalorder %s113, %s115
    %p122 = scmp.eq.s32.totalorder %s21, 1
    %p123 = por %p121, %p122
    %p124 = scmp.ne.s32.totalorder %s115, %s116
    %p125 = scmp.eq.s32.totalorder %s21, 0
    %p126 = por %p124, %p125
    %p127 = scmp.ne.s32.totalorder %s115, %s116
    %p128 = scmp.eq.s32.totalorder %s22, 1
    %p129 = por %p127, %p128
    %p131 = scmp.ne.s32.totalorder %s116, %s130
    %p132 = scmp.eq.s32.totalorder %s22, 0
    %p133 = por %p131, %p132
    %s135 = sadd.s32 %s134, 1
    %p138 = scmp.eq.s32.totalorder %s16, 1
    %p139 = scmp.ne.s32.totalorder %s134, %s136
    %p140 = scmp.eq.s32.totalorder %s16, 0
    %p141 = por %p139, %p140
    %p142 = scmp.ne.s32.totalorder %s134, %s136
    %p143 = scmp.eq.s32.totalorder %s21, 1
    %p144 = por %p142, %p143
    %p145 = scmp.ne.s32.totalorder %s136, %s137
    %p146 = scmp.eq.s32.totalorder %s21, 0
    %p147 = por %p145, %p146
    %p148 = scmp.ne.s32.totalorder %s136, %s137
    %p149 = scmp.eq.s32.totalorder %s22, 1
    %p150 = por %p148, %p149
    %p152 = scmp.ne.s32.totalorder %s137, %s151
    %p153 = scmp.eq.s32.totalorder %s22, 0
    %p154 = por %p152, %p153
    %s156 = sadd.s32 %s155, 1
    %p159 = scmp.eq.s32.totalorder %s16, 1
    %p160 = scmp.ne.s32.totalorder %s155, %s157
    %p161 = scmp.eq.s32.totalorder %s16, 0
    %p162 = por %p160, %p161
    %p163 = scmp.ne.s32.totalorder %s155, %s157
    %p164 = scmp.eq.s32.totalorder %s21, 1
    %p165 = por %p163, %p164
    %p166 = scmp.ne.s32.totalorder %s157, %s158
    %p167 = scmp.eq.s32.totalorder %s21, 0
    %p168 = por %p166, %p167
    %p169 = scmp.ne.s32.totalorder %s157, %s158
    %p170 = scmp.eq.s32.totalorder %s22, 1
    %p171 = por %p169, %p170
    %p173 = scmp.ne.s32.totalorder %s158, %s172
    %p174 = scmp.eq.s32.totalorder %s22, 0
    %p175 = por %p173, %p174
    %s177 = sadd.s32 %s176, 1
    %p180 = scmp.eq.s32.totalorder %s16, 1
    %p181 = scmp.ne.s32.totalorder %s176, %s178
    %p182 = scmp.eq.s32.totalorder %s16, 0
    %p183 = por %p181, %p182
    %p184 = scmp.ne.s32.totalorder %s176, %s178
    %p185 = scmp.eq.s32.totalorder %s21, 1
    %p186 = por %p184, %p185
    %p187 = scmp.ne.s32.totalorder %s178, %s179
    %p188 = scmp.eq.s32.totalorder %s21, 0
    %p189 = por %p187, %p188
    %p190 = scmp.ne.s32.totalorder %s178, %s179
    %p191 = scmp.eq.s32.totalorder %s22, 1
    %p192 = por %p190, %p191
    %p194 = scmp.ne.s32.totalorder %s179, %s193
    %p195 = scmp.eq.s32.totalorder %s22, 0
    %p196 = por %p194, %p195
    %s198 = sadd.s32 %s197, 1
    %p201 = scmp.eq.s32.totalorder %s16, 1
    %p202 = scmp.ne.s32.totalorder %s197, %s199
    %p203 = scmp.eq.s32.totalorder %s16, 0
    %p204 = por %p202, %p203
    %p205 = scmp.ne.s32.totalorder %s197, %s199
    %p206 = scmp.eq.s32.totalorder %s21, 1
    %p207 = por %p205, %p206
    %p208 = scmp.ne.s32.totalorder %s199, %s200
    %p209 = scmp.eq.s32.totalorder %s21, 0
    %p210 = por %p208, %p209
    %p211 = scmp.ne.s32.totalorder %s199, %s200
    %p212 = scmp.eq.s32.totalorder %s22, 1
    %p213 = por %p211, %p212
    %p215 = scmp.ne.s32.totalorder %s200, %s214
    %p216 = scmp.eq.s32.totalorder %s22, 0
    %p217 = por %p215, %p216
    %s219 = sadd.s32 %s218, 1
    %p222 = scmp.eq.s32.totalorder %s16, 1
    %p223 = scmp.ne.s32.totalorder %s218, %s220
    %p224 = scmp.eq.s32.totalorder %s16, 0
    %p225 = por %p223, %p224
    %p226 = scmp.ne.s32.totalorder %s218, %s220
    %p227 = scmp.eq.s32.totalorder %s21, 1
    %p228 = por %p226, %p227
    %p229 = scmp.ne.s32.totalorder %s220, %s221
    %p230 = scmp.eq.s32.totalorder %s21, 0
    %p231 = por %p229, %p230
    %p232 = scmp.ne.s32.totalorder %s220, %s221
    %p233 = scmp.eq.s32.totalorder %s22, 1
    %p234 = por %p232, %p233
    %p236 = scmp.ne.s32.totalorder %s221, %s235
    %p237 = scmp.eq.s32.totalorder %s22, 0
    %p238 = por %p236, %p237
    %s239 = ssub.s32 %s16, %s23
    %p240 = scmp.eq.s32.totalorder %s239, 0
    %s242 = sadd.s32 %s241, 1
    %s243 = scalar_select %p240, %s241, %s242
    %p246 = pneg %p240
    %p247 = scmp.eq.s32.totalorder %s16, 1
    %p248 = por %p246, %p247
    %p249 = scmp.ne.s32.totalorder %s241, %s244
    %p250 = scmp.eq.s32.totalorder %s16, 0
    %p251 = por %p249, %p250
    %p252 = scmp.ne.s32.totalorder %s241, %s244
    %p253 = scmp.eq.s32.totalorder %s21, 1
    %p254 = por %p252, %p253
    %p255 = scmp.ne.s32.totalorder %s244, %s245
    %p256 = scmp.eq.s32.totalorder %s21, 0
    %p257 = por %p255, %p256
    %p258 = scmp.ne.s32.totalorder %s244, %s245
    %p259 = scmp.eq.s32.totalorder %s22, 1
    %p260 = por %p258, %p259
    %p262 = scmp.ne.s32.totalorder %s245, %s261
    %p263 = scmp.eq.s32.totalorder %s22, 0
    %p264 = por %p262, %p263
    %p265 = scmp.le.s32.totalorder 1, %s16
    %p266 = scmp.lt.s32.totalorder %s16, 3
    %p267 = pnand %p265, %p266
    %p268 = pneg %p267
    // Predicated region
    $region9: #{autoencoder_forward.1} parent=5 // pred_check
      _
    $region10: #{autoencoder_forward.1} parent=5 // pred_check_branch
      %270 = sbr.rel (%p267) target = $region12
    $region11: #{autoencoder_forward.1} parent=5 // pred_region
      %s271 = ssub.s32 %s16, 1
      // Predicated region
      $region13: #{autoencoder_forward.1} parent=11 // pred_check
        %p272 = pneg %p63
      $region14: #{autoencoder_forward.1} parent=11 // pred_check_branch
        %274 = sbr.rel (%p272) target = $region16
      $region15: #{autoencoder_forward.1} parent=11 // pred_region
        _
      $region16: #{autoencoder_forward.1} parent=11 // pred_fallthru
        _
      // Predicated region
      $region17: #{autoencoder_forward.1} parent=11 // pred_check
        %p275 = pneg %p84
      $region18: #{autoencoder_forward.1} parent=11 // pred_check_branch
        %277 = sbr.rel (%p275) target = $region20
      $region19: #{autoencoder_forward.1} parent=11 // pred_region
        _
      $region20: #{autoencoder_forward.1} parent=11 // pred_fallthru
        _
      // Predicated region
      $region21: #{autoencoder_forward.1} parent=11 // pred_check
        %p278 = pneg %p105
      $region22: #{autoencoder_forward.1} parent=11 // pred_check_branch
        %280 = sbr.rel (%p278) target = $region24
      $region23: #{autoencoder_forward.1} parent=11 // pred_region
        _
      $region24: #{autoencoder_forward.1} parent=11 // pred_fallthru
        _
      // Predicated region
      $region25: #{autoencoder_forward.1} parent=11 // pred_check
        %p281 = pneg %p126
      $region26: #{autoencoder_forward.1} parent=11 // pred_check_branch
        %283 = sbr.rel (%p281) target = $region28
      $region27: #{autoencoder_forward.1} parent=11 // pred_region
        _
      $region28: #{autoencoder_forward.1} parent=11 // pred_fallthru
        _
      // Predicated region
      $region29: #{autoencoder_forward.1} parent=11 // pred_check
        %p284 = pneg %p147
      $region30: #{autoencoder_forward.1} parent=11 // pred_check_branch
        %286 = sbr.rel (%p284) target = $region32
      $region31: #{autoencoder_forward.1} parent=11 // pred_region
        _
      $region32: #{autoencoder_forward.1} parent=11 // pred_fallthru
        _
      // Predicated region
      $region33: #{autoencoder_forward.1} parent=11 // pred_check
        %p287 = pneg %p168
      $region34: #{autoencoder_forward.1} parent=11 // pred_check_branch
        %289 = sbr.rel (%p287) target = $region36
      $region35: #{autoencoder_forward.1} parent=11 // pred_region
        _
      $region36: #{autoencoder_forward.1} parent=11 // pred_fallthru
        _
      // Predicated region
      $region37: #{autoencoder_forward.1} parent=11 // pred_check
        %p290 = pneg %p189
      $region38: #{autoencoder_forward.1} parent=11 // pred_check_branch
        %292 = sbr.rel (%p290) target = $region40
      $region39: #{autoencoder_forward.1} parent=11 // pred_region
        _
      $region40: #{autoencoder_forward.1} parent=11 // pred_fallthru
        _
      // Predicated region
      $region41: #{autoencoder_forward.1} parent=11 // pred_check
        %p293 = pneg %p210
      $region42: #{autoencoder_forward.1} parent=11 // pred_check_branch
        %295 = sbr.rel (%p293) target = $region44
      $region43: #{autoencoder_forward.1} parent=11 // pred_region
        _
      $region44: #{autoencoder_forward.1} parent=11 // pred_fallthru
        _
      // Predicated region
      $region45: #{autoencoder_forward.1} parent=11 // pred_check
        %p296 = pneg %p231
      $region46: #{autoencoder_forward.1} parent=11 // pred_check_branch
        %298 = sbr.rel (%p296) target = $region48
      $region47: #{autoencoder_forward.1} parent=11 // pred_region
        _
      $region48: #{autoencoder_forward.1} parent=11 // pred_fallthru
        _
    $region12: #{autoencoder_forward.1} parent=5 // pred_fallthru
      _
    %p299 = scmp.lt.s32.totalorder %s16, 2
    // Predicated region
    $region49: #{autoencoder_forward.1} parent=5 // pred_check
      %p300 = pneg %p299
    $region50: #{autoencoder_forward.1} parent=5 // pred_check_branch
      %302 = sbr.rel (%p300) target = $region52
    $region51: #{autoencoder_forward.1} parent=5 // pred_region
      // Predicated region
      $region53: #{autoencoder_forward.1} parent=51 // pred_check
        %p303 = pneg %p36
      $region54: #{autoencoder_forward.1} parent=51 // pred_check_branch
        %305 = sbr.rel (%p303) target = $region56
      $region55: #{autoencoder_forward.1} parent=51 // pred_region
        %p306 = scmp.lt.s32.totalorder %s16, 1
        %s307 = scalar_select %p306, %s16, 1
        %s308 = smul.addr %s307, 2
        %s309 = smul.addr %s308, 8
        %s310 = scalar_lea.vmem %s0, %s309
      $region56: #{autoencoder_forward.1} parent=51 // pred_fallthru
        _
    $region52: #{autoencoder_forward.1} parent=5 // pred_fallthru
      _
    %p311 = scmp.le.s32.totalorder 1, %s16
    %p312 = scmp.lt.s32.totalorder %s16, 3
    %p313 = pnand %p311, %p312
    %p314 = pneg %p313
    // Predicated region
    $region57: #{autoencoder_forward.1} parent=5 // pred_check
      _
    $region58: #{autoencoder_forward.1} parent=5 // pred_check_branch
      %316 = sbr.rel (%p313) target = $region60
    $region59: #{autoencoder_forward.1} parent=5 // pred_region
      %s317 = ssub.s32 %s16, 1
      %p318 = scmp.lt.s32.totalorder %s21, 1
      %s319 = scalar_select %p318, %s21, 1
      %s320 = smul.addr %s319, 2
      %s321 = smul.addr %s320, 8
      %s322 = scalar_lea.vmem %s0, %s321
      %p323 = pneg %p42
      %p324 = pneg %p39
      %p325 = pneg %p63
      %p326 = pneg %p60
      %p327 = pneg %p84
      %p328 = pneg %p81
      %p329 = pneg %p105
      %p330 = pneg %p102
      %p331 = pneg %p126
      %p332 = pneg %p123
      %p333 = pneg %p147
      %p334 = pneg %p144
      %p335 = pneg %p168
      %p336 = pneg %p165
      %p337 = pneg %p189
      %p338 = pneg %p186
      %p339 = pneg %p210
      %p340 = pneg %p207
      %p341 = pneg %p231
      %p342 = pneg %p228
      %p343 = pneg %p257
      %p344 = pneg %p254
      %p345 = scmp.lt.s32.totalorder %s21, 1
      %s346 = scalar_select %p345, %s21, 1
      %s347 = smul.addr %s346, 3
      %s348 = smul.addr %s347, 8
      %s349 = scalar_lea.vmem %s10, %s348
      %p350 = scmp.lt.s32.totalorder %s21, 1
      %s351 = scalar_select %p350, %s21, 1
      %s352 = smul.addr %s351, 2
      %s353 = smul.addr %s352, 8
      %s354 = scalar_lea.vmem %s0, %s353
      %p355 = scmp.lt.s32.totalorder %s21, 1
      %s356 = scalar_select %p355, %s21, 1
      %s357 = smul.addr %s356, 3
      %s358 = smul.addr %s357, 8
      %s359 = scalar_lea.vmem %s10, %s358
      %vm360 = vcmask 146432
      %361 = vst.msk [vmem:[#allocation2] sm:$0xff] %vm360, 0.0
      %362 = vst.msk [vmem:[#allocation2 + $0x8] sm:$0xff] %vm360, 0.0
      %vm363 = vcmask 140288
      %364 = vst.msk [vmem:[#allocation2 + $0x10] sm:$0x3] %vm363, 0.0
      %v365 = vld [vmem:[%s354] sm:$0xff]
      %v366 = vld [vmem:[%s354 + $0x8] sm:$0xff]
      %369 = vrot.lane.b32.xlu0 %v365, 1
      %v370 = vpop.permute.xlu0 %369
      %371 = vrot.lane.b32.xlu0 %v366, 1
      %v372 = vpop.permute.xlu0 %371
      %vm375 = vcmask 138248
      %376 = vst.msk [vmem:[#allocation2 + $0x1] sm:$0xff] %vm375, %v370
      %377 = vst.msk [vmem:[#allocation2 + $0x9] sm:$0xff] %vm375, %v372
      %v378 = vld [vmem:[#allocation2] sm:$0xff]
      %v379 = vld [vmem:[#allocation2 + $0x8] sm:$0xff]
      %v380 = vld [vmem:[%s1] sm:$0xff]
      %v381 = vld [vmem:[%s1 + $0x8] sm:$0xff]
      %v382 = vld [vmem:[%s1 + $0x10] sm:$0x3]
      %v383 = vld [vmem:[#allocation2 + $0x1] sm:$0xff]
      %v384 = vld [vmem:[#allocation2 + $0x9] sm:$0xff]
      %v385 = vld [vmem:[%s1 + $0x12] sm:$0xff]
      %v386 = vld [vmem:[%s1 + $0x1a] sm:$0xff]
      %v387 = vld [vmem:[%s1 + $0x22] sm:$0x3]
      %v389 = vsel %vm360, %v383, 0
      %v392 = vsel %vm360, %v384, 0
      %vm394 = vcmask 1041408
      %v396 = vsel %vm394, %v387, 0
      %398 = vmatprep.subr.mxu0 0.0
      %399 = vmatpush1.msra.mxu0 %v385
      %400 = vmatprep.subr.mxu0 0.0
      %401 = vmatpush1.msra.mxu0 %v386
      %402 = vmatprep.subr.mxu0 0.0
      %403 = vmatpush1.msra.mxu0 %v396
      %404 = vmatprep.subr.mxu0 0.0
      %405 = vmatpush1.msra.mxu0 0.0
      %406 = vmatprep.subr.mxu0 0.0
      %407 = vmatpush1.msra.mxu0 0.0
      %408 = vmatprep.subr.mxu0 0.0
      %409 = vmatpush1.msra.mxu0 0.0
      %410 = vmatprep.subr.mxu0 0.0
      %411 = vmatpush1.msra.mxu0 0.0
      %412 = vmatprep.subr.mxu0 0.0
      %413 = vmatpush1.msra.mxu0 0.0
      %414 = vmatprep.subr.mxu0 0.0
      %415 = vmatpush1.msra.mxu0 0.0
      %416 = vmatprep.subr.mxu0 0.0
      %417 = vmatpush1.msra.mxu0 0.0
      %418 = vmatprep.subr.mxu0 0.0
      %419 = vmatpush1.msra.mxu0 0.0
      %420 = vmatprep.subr.mxu0 0.0
      %421 = vmatpush1.msra.mxu0 0.0
      %422 = vmatprep.subr.mxu0 0.0
      %423 = vmatpush1.msra.mxu0 0.0
      %424 = vmatprep.subr.mxu0 0.0
      %425 = vmatpush1.msra.mxu0 0.0
      %426 = vmatprep.subr.mxu0 0.0
      %427 = vmatpush1.msra.mxu0 0.0
      %428 = vmatprep.subr.mxu0 0.0
      %429 = vmatpush1.msra.mxu0 0.0
      %430 = vmatprep.subr.mxu0 0.0
      %431 = vmatpush1.msra.mxu0 0.0
      %432 = vmatprep.subr.mxu0 0.0
      %433 = vmatpush1.msra.mxu0 0.0
      %434 = vmatprep.subr.mxu0 0.0
      %435 = vmatpush1.msra.mxu0 0.0
      %436 = vmatprep.subr.mxu0 0.0
      %437 = vmatpush1.msra.mxu0 0.0
      %438 = vmatprep.subr.mxu0 0.0
      %439 = vmatpush1.msra.mxu0 0.0
      %440 = vmatprep.subr.mxu0 0.0
      %441 = vmatpush1.msra.mxu0 0.0
      %442 = vmatprep.subr.mxu0 0.0
      %443 = vmatpush1.msra.mxu0 0.0
      %444 = vmatprep.subr.mxu0 0.0
      %445 = vmatpush1.msra.mxu0 0.0
      %446 = vmatprep.subr.mxu0 0.0
      %447 = vmatpush1.msra.mxu0 0.0
      %448 = vmatprep.subr.mxu0 0.0
      %449 = vmatpush1.msra.mxu0 0.0
      %450 = vmatprep.subr.mxu0 0.0
      %451 = vmatpush1.msra.mxu0 0.0
      %452 = vmatprep.subr.mxu0 0.0
      %453 = vmatpush1.msra.mxu0 0.0
      %454 = vmatprep.subr.mxu0 0.0
      %455 = vmatpush1.msra.mxu0 0.0
      %456 = vmatprep.subr.mxu0 0.0
      %457 = vmatpush1.msra.mxu0 0.0
      %458 = vmatprep.subr.mxu0 0.0
      %459 = vmatpush1.msra.mxu0 0.0
      %460 = vmatprep.subr.mxu0 0.0
      %461 = vmatpush1.msra.mxu0 0.0
      %462 = vmatprep.mubr.f32.mxu0 0.0
      %463 = vmatmul.mubr.f32.gmra.mrb[0].mxu0 %v389
      %v464 = vpop.f32.mrb[0].mxu0
      %v465 = vadd.f32 0.0, %v464
      %v466 = vpop.f32.mrb[0].mxu0
      %467 = vmatprep.mubr.f32.mxu0 0.0
      %468 = vmatmul.mubr.f32.gmra.mrb[0].mxu0 %v392
      %v469 = vpop.f32.mrb[0].mxu0
      %v470 = vadd.f32 0.0, %v469
      %v471 = vpop.f32.mrb[0].mxu0
      %472 = vdwg.mxu0
      %v474 = vsel %vm360, %v378, 0
      %v477 = vsel %vm360, %v379, 0
      %v480 = vsel %vm394, %v382, 0
      %482 = vmatprep.subr.mxu0 0.0
      %483 = vmatpush1.msra.mxu0 %v380
      %484 = vmatprep.subr.mxu0 0.0
      %485 = vmatpush1.msra.mxu0 %v381
      %486 = vmatprep.subr.mxu0 0.0
      %487 = vmatpush1.msra.mxu0 %v480
      %488 = vmatprep.subr.mxu0 0.0
      %489 = vmatpush1.msra.mxu0 0.0
      %490 = vmatprep.subr.mxu0 0.0
      %491 = vmatpush1.msra.mxu0 0.0
      %492 = vmatprep.subr.mxu0 0.0
      %493 = vmatpush1.msra.mxu0 0.0
      %494 = vmatprep.subr.mxu0 0.0
      %495 = vmatpush1.msra.mxu0 0.0
      %496 = vmatprep.subr.mxu0 0.0
      %497 = vmatpush1.msra.mxu0 0.0
      %498 = vmatprep.subr.mxu0 0.0
      %499 = vmatpush1.msra.mxu0 0.0
      %500 = vmatprep.subr.mxu0 0.0
      %501 = vmatpush1.msra.mxu0 0.0
      %502 = vmatprep.subr.mxu0 0.0
      %503 = vmatpush1.msra.mxu0 0.0
      %504 = vmatprep.subr.mxu0 0.0
      %505 = vmatpush1.msra.mxu0 0.0
      %506 = vmatprep.subr.mxu0 0.0
      %507 = vmatpush1.msra.mxu0 0.0
      %508 = vmatprep.subr.mxu0 0.0
      %509 = vmatpush1.msra.mxu0 0.0
      %510 = vmatprep.subr.mxu0 0.0
      %511 = vmatpush1.msra.mxu0 0.0
      %512 = vmatprep.subr.mxu0 0.0
      %513 = vmatpush1.msra.mxu0 0.0
      %514 = vmatprep.subr.mxu0 0.0
      %515 = vmatpush1.msra.mxu0 0.0
      %516 = vmatprep.subr.mxu0 0.0
      %517 = vmatpush1.msra.mxu0 0.0
      %518 = vmatprep.subr.mxu0 0.0
      %519 = vmatpush1.msra.mxu0 0.0
      %520 = vmatprep.subr.mxu0 0.0
      %521 = vmatpush1.msra.mxu0 0.0
      %522 = vmatprep.subr.mxu0 0.0
      %523 = vmatpush1.msra.mxu0 0.0
      %524 = vmatprep.subr.mxu0 0.0
      %525 = vmatpush1.msra.mxu0 0.0
      %526 = vmatprep.subr.mxu0 0.0
      %527 = vmatpush1.msra.mxu0 0.0
      %528 = vmatprep.subr.mxu0 0.0
      %529 = vmatpush1.msra.mxu0 0.0
      %530 = vmatprep.subr.mxu0 0.0
      %531 = vmatpush1.msra.mxu0 0.0
      %532 = vmatprep.subr.mxu0 0.0
      %533 = vmatpush1.msra.mxu0 0.0
      %534 = vmatprep.subr.mxu0 0.0
      %535 = vmatpush1.msra.mxu0 0.0
      %536 = vmatprep.subr.mxu0 0.0
      %537 = vmatpush1.msra.mxu0 0.0
      %538 = vmatprep.subr.mxu0 0.0
      %539 = vmatpush1.msra.mxu0 0.0
      %540 = vmatprep.subr.mxu0 0.0
      %541 = vmatpush1.msra.mxu0 0.0
      %542 = vmatprep.subr.mxu0 0.0
      %543 = vmatpush1.msra.mxu0 0.0
      %544 = vmatprep.subr.mxu0 0.0
      %545 = vmatpush1.msra.mxu0 0.0
      %546 = vmatprep.mubr.f32.mxu0 0.0
      %547 = vmatmul.mubr.f32.gmra.mrb[0].mxu0 %v474
      %v548 = vpop.f32.mrb[0].mxu0
      %v549 = vadd.f32 %v465, %v548
      %v550 = vpop.f32.mrb[0].mxu0
      %551 = vmatprep.mubr.f32.mxu0 0.0
      %552 = vmatmul.mubr.f32.gmra.mrb[0].mxu0 %v477
      %v553 = vpop.f32.mrb[0].mxu0
      %v554 = vadd.f32 %v470, %v553
      %v555 = vpop.f32.mrb[0].mxu0
      %556 = vdwg.mxu0
      %v557 = vld [vmem:[#allocation2 + $0x2] sm:$0xff]
      %v558 = vld [vmem:[#allocation2 + $0xa] sm:$0xff]
      %v559 = vld [vmem:[%s1 + $0x24] sm:$0xff]
      %v560 = vld [vmem:[%s1 + $0x2c] sm:$0xff]
      %v561 = vld [vmem:[%s1 + $0x34] sm:$0x3]
      %v563 = vsel %vm360, %v557, 0
      %v566 = vsel %vm360, %v558, 0
      %v569 = vsel %vm394, %v561, 0
      %571 = vmatprep.subr.mxu0 0.0
      %572 = vmatpush1.msra.mxu0 %v559
      %573 = vmatprep.subr.mxu0 0.0
      %574 = vmatpush1.msra.mxu0 %v560
      %575 = vmatprep.subr.mxu0 0.0
      %576 = vmatpush1.msra.mxu0 %v569
      %577 = vmatprep.subr.mxu0 0.0
      %578 = vmatpush1.msra.mxu0 0.0
      %579 = vmatprep.subr.mxu0 0.0
      %580 = vmatpush1.msra.mxu0 0.0
      %581 = vmatprep.subr.mxu0 0.0
      %582 = vmatpush1.msra.mxu0 0.0
      %583 = vmatprep.subr.mxu0 0.0
      %584 = vmatpush1.msra.mxu0 0.0
      %585 = vmatprep.subr.mxu0 0.0
      %586 = vmatpush1.msra.mxu0 0.0
      %587 = vmatprep.subr.mxu0 0.0
      %588 = vmatpush1.msra.mxu0 0.0
      %589 = vmatprep.subr.mxu0 0.0
      %590 = vmatpush1.msra.mxu0 0.0
      %591 = vmatprep.subr.mxu0 0.0
      %592 = vmatpush1.msra.mxu0 0.0
      %593 = vmatprep.subr.mxu0 0.0
      %594 = vmatpush1.msra.mxu0 0.0
      %595 = vmatprep.subr.mxu0 0.0
      %596 = vmatpush1.msra.mxu0 0.0
      %597 = vmatprep.subr.mxu0 0.0
      %598 = vmatpush1.msra.mxu0 0.0
      %599 = vmatprep.subr.mxu0 0.0
      %600 = vmatpush1.msra.mxu0 0.0
      %601 = vmatprep.subr.mxu0 0.0
      %602 = vmatpush1.msra.mxu0 0.0
      %603 = vmatprep.subr.mxu0 0.0
      %604 = vmatpush1.msra.mxu0 0.0
      %605 = vmatprep.subr.mxu0 0.0
      %606 = vmatpush1.msra.mxu0 0.0
      %607 = vmatprep.subr.mxu0 0.0
      %608 = vmatpush1.msra.mxu0 0.0
      %609 = vmatprep.subr.mxu0 0.0
      %610 = vmatpush1.msra.mxu0 0.0
      %611 = vmatprep.subr.mxu0 0.0
      %612 = vmatpush1.msra.mxu0 0.0
      %613 = vmatprep.subr.mxu0 0.0
      %614 = vmatpush1.msra.mxu0 0.0
      %615 = vmatprep.subr.mxu0 0.0
      %616 = vmatpush1.msra.mxu0 0.0
      %617 = vmatprep.subr.mxu0 0.0
      %618 = vmatpush1.msra.mxu0 0.0
      %619 = vmatprep.subr.mxu0 0.0
      %620 = vmatpush1.msra.mxu0 0.0
      %621 = vmatprep.subr.mxu0 0.0
      %622 = vmatpush1.msra.mxu0 0.0
      %623 = vmatprep.subr.mxu0 0.0
      %624 = vmatpush1.msra.mxu0 0.0
      %625 = vmatprep.subr.mxu0 0.0
      %626 = vmatpush1.msra.mxu0 0.0
      %627 = vmatprep.subr.mxu0 0.0
      %628 = vmatpush1.msra.mxu0 0.0
      %629 = vmatprep.subr.mxu0 0.0
      %630 = vmatpush1.msra.mxu0 0.0
      %631 = vmatprep.subr.mxu0 0.0
      %632 = vmatpush1.msra.mxu0 0.0
      %633 = vmatprep.subr.mxu0 0.0
      %634 = vmatpush1.msra.mxu0 0.0
      %635 = vmatprep.mubr.f32.mxu0 0.0
      %636 = vmatmul.mubr.f32.gmra.mrb[0].mxu0 %v563
      %v637 = vpop.f32.mrb[0].mxu0
      %v638 = vadd.f32 0.0, %v637
      %v639 = vpop.f32.mrb[0].mxu0
      %640 = vmatprep.mubr.f32.mxu0 0.0
      %641 = vmatmul.mubr.f32.gmra.mrb[0].mxu0 %v566
      %v642 = vpop.f32.mrb[0].mxu0
      %v643 = vadd.f32 0.0, %v642
      %v644 = vpop.f32.mrb[0].mxu0
      %645 = vdwg.mxu0
      %v646 = vadd.f32 %v549, %v638
      %v647 = vadd.f32 %v554, %v643
      %v648 = vmax.f32 %v646, 0.0
      %v649 = vmax.f32 %v647, 0.0
      %652 = vrot.lane.b32.xlu0 %v648, 80
      %v653 = vpop.permute.xlu0 %652
      %654 = vrot.lane.b32.xlu0 %v649, 80
      %v655 = vpop.permute.xlu0 %654
      %v658 = vmax.f32 %v648, %v653
      %v659 = vmax.f32 %v649, %v655
      %vm660 = vcmask 392192
      %661 = vst.msk [vmem:[#allocation3] sm:$0xff] %vm660, %v658
      %662 = vst.msk [vmem:[#allocation3 + $0x8] sm:$0xff] %vm660, %v659
      %v663 = vld [vmem:[#allocation3] ss:$2 sm:$0xff]
      %s664 = scalar_lea.vmem [#allocation3], 1
      %v665 = vld [vmem:[%s664] ss:$2 sm:$0xff]
      %v666 = vmax.f32 %v663, %v665
      %vm667 = vcmask 490496
      %668 = vst.msk [vmem:[#allocation4] sm:$0xff] %vm667, 0.0
      %vm669 = vcmask 484352
      %670 = vst.msk [vmem:[#allocation4 + $0x8] sm:$0x3] %vm669, 0.0
      %672 = vrot.lane.b32.xlu0 %v666, 6
      %v673 = vpop.permute.xlu0 %672
      %vm675 = vcmask 441392
      %676 = vst.msk [vmem:[#allocation4 + $0x1] sm:$0xff] %vm675, %v673
      %v677 = vld [vmem:[#allocation4] sm:$0xff]
      %v678 = vld [vmem:[%s2] sm:$0xff]
      %v679 = vld [vmem:[%s2 + $0x8] sm:$0xff]
      %v680 = vld [vmem:[%s2 + $0x10] sm:$0xff]
      %v681 = vld [vmem:[%s2 + $0x18] sm:$0xff]
      %v682 = vld [vmem:[%s2 + $0x20] sm:$0xff]
      %v683 = vld [vmem:[%s2 + $0x28] sm:$0xff]
      %v684 = vld [vmem:[%s2 + $0x30] sm:$0xff]
      %v685 = vld [vmem:[%s2 + $0x38] sm:$0xf]
      %v686 = vld [vmem:[#allocation4 + $0x1] sm:$0xff]
      %v687 = vld [vmem:[%s2 + $0x3c] sm:$0xff]
      %v688 = vld [vmem:[%s2 + $0x44] sm:$0xff]
      %v689 = vld [vmem:[%s2 + $0x4c] sm:$0xff]
      %v690 = vld [vmem:[%s2 + $0x54] sm:$0xff]
      %v691 = vld [vmem:[%s2 + $0x5c] sm:$0xff]
      %v692 = vld [vmem:[%s2 + $0x64] sm:$0xff]
      %v693 = vld [vmem:[%s2 + $0x6c] sm:$0xff]
      %v694 = vld [vmem:[%s2 + $0x74] sm:$0xf]
      %v696 = vsel %vm667, %v686, 0
      %vm698 = vcmask 1043456
      %v700 = vsel %vm698, %v694, 0
      %702 = vmatprep.subr.mxu0 0.0
      %703 = vmatpush1.msra.mxu0 %v687
      %704 = vmatprep.subr.mxu0 0.0
      %705 = vmatpush1.msra.mxu0 %v688
      %706 = vmatprep.subr.mxu0 0.0
      %707 = vmatpush1.msra.mxu0 %v689
      %708 = vmatprep.subr.mxu0 0.0
      %709 = vmatpush1.msra.mxu0 %v690
      %710 = vmatprep.subr.mxu0 0.0
      %711 = vmatpush1.msra.mxu0 %v691
      %712 = vmatprep.subr.mxu0 0.0
      %713 = vmatpush1.msra.mxu0 %v692
      %714 = vmatprep.subr.mxu0 0.0
      %715 = vmatpush1.msra.mxu0 %v693
      %716 = vmatprep.subr.mxu0 0.0
      %717 = vmatpush1.msra.mxu0 %v700
      %718 = vmatprep.subr.mxu0 0.0
      %719 = vmatpush1.msra.mxu0 0.0
      %720 = vmatprep.subr.mxu0 0.0
      %721 = vmatpush1.msra.mxu0 0.0
      %722 = vmatprep.subr.mxu0 0.0
      %723 = vmatpush1.msra.mxu0 0.0
      %724 = vmatprep.subr.mxu0 0.0
      %725 = vmatpush1.msra.mxu0 0.0
      %726 = vmatprep.subr.mxu0 0.0
      %727 = vmatpush1.msra.mxu0 0.0
      %728 = vmatprep.subr.mxu0 0.0
      %729 = vmatpush1.msra.mxu0 0.0
      %730 = vmatprep.subr.mxu0 0.0
      %731 = vmatpush1.msra.mxu0 0.0
      %732 = vmatprep.subr.mxu0 0.0
      %733 = vmatpush1.msra.mxu0 0.0
      %734 = vmatprep.subr.mxu0 0.0
      %735 = vmatpush1.msra.mxu0 0.0
      %736 = vmatprep.subr.mxu0 0.0
      %737 = vmatpush1.msra.mxu0 0.0
      %738 = vmatprep.subr.mxu0 0.0
      %739 = vmatpush1.msra.mxu0 0.0
      %740 = vmatprep.subr.mxu0 0.0
      %741 = vmatpush1.msra.mxu0 0.0
      %742 = vmatprep.subr.mxu0 0.0
      %743 = vmatpush1.msra.mxu0 0.0
      %744 = vmatprep.subr.mxu0 0.0
      %745 = vmatpush1.msra.mxu0 0.0
      %746 = vmatprep.subr.mxu0 0.0
      %747 = vmatpush1.msra.mxu0 0.0
      %748 = vmatprep.subr.mxu0 0.0
      %749 = vmatpush1.msra.mxu0 0.0
      %750 = vmatprep.subr.mxu0 0.0
      %751 = vmatpush1.msra.mxu0 0.0
      %752 = vmatprep.subr.mxu0 0.0
      %753 = vmatpush1.msra.mxu0 0.0
      %754 = vmatprep.subr.mxu0 0.0
      %755 = vmatpush1.msra.mxu0 0.0
      %756 = vmatprep.subr.mxu0 0.0
      %757 = vmatpush1.msra.mxu0 0.0
      %758 = vmatprep.subr.mxu0 0.0
      %759 = vmatpush1.msra.mxu0 0.0
      %760 = vmatprep.subr.mxu0 0.0
      %761 = vmatpush1.msra.mxu0 0.0
      %762 = vmatprep.subr.mxu0 0.0
      %763 = vmatpush1.msra.mxu0 0.0
      %764 = vmatprep.subr.mxu0 0.0
      %765 = vmatpush1.msra.mxu0 0.0
      %766 = vmatprep.mubr.f32.mxu0 0.0
      %767 = vmatmul.mubr.f32.gmra.mrb[0].mxu0 %v696
      %v768 = vpop.f32.mrb[0].mxu0
      %v769 = vadd.f32 0.0, %v768
      %v770 = vpop.f32.mrb[0].mxu0
      %771 = vdwg.mxu0
      %v773 = vsel %vm667, %v677, 0
      %v776 = vsel %vm698, %v685, 0
      %778 = vmatprep.subr.mxu0 0.0
      %779 = vmatpush1.msra.mxu0 %v678
      %780 = vmatprep.subr.mxu0 0.0
      %781 = vmatpush1.msra.mxu0 %v679
      %782 = vmatprep.subr.mxu0 0.0
      %783 = vmatpush1.msra.mxu0 %v680
      %784 = vmatprep.subr.mxu0 0.0
      %785 = vmatpush1.msra.mxu0 %v681
      %786 = vmatprep.subr.mxu0 0.0
      %787 = vmatpush1.msra.mxu0 %v682
      %788 = vmatprep.subr.mxu0 0.0
      %789 = vmatpush1.msra.mxu0 %v683
      %790 = vmatprep.subr.mxu0 0.0
      %791 = vmatpush1.msra.mxu0 %v684
      %792 = vmatprep.subr.mxu0 0.0
      %793 = vmatpush1.msra.mxu0 %v776
      %794 = vmatprep.subr.mxu0 0.0
      %795 = vmatpush1.msra.mxu0 0.0
      %796 = vmatprep.subr.mxu0 0.0
      %797 = vmatpush1.msra.mxu0 0.0
      %798 = vmatprep.subr.mxu0 0.0
      %799 = vmatpush1.msra.mxu0 0.0
      %800 = vmatprep.subr.mxu0 0.0
      %801 = vmatpush1.msra.mxu0 0.0
      %802 = vmatprep.subr.mxu0 0.0
      %803 = vmatpush1.msra.mxu0 0.0
      %804 = vmatprep.subr.mxu0 0.0
      %805 = vmatpush1.msra.mxu0 0.0
      %806 = vmatprep.subr.mxu0 0.0
      %807 = vmatpush1.msra.mxu0 0.0
      %808 = vmatprep.subr.mxu0 0.0
      %809 = vmatpush1.msra.mxu0 0.0
      %810 = vmatprep.subr.mxu0 0.0
      %811 = vmatpush1.msra.mxu0 0.0
      %812 = vmatprep.subr.mxu0 0.0
      %813 = vmatpush1.msra.mxu0 0.0
      %814 = vmatprep.subr.mxu0 0.0
      %815 = vmatpush1.msra.mxu0 0.0
      %816 = vmatprep.subr.mxu0 0.0
      %817 = vmatpush1.msra.mxu0 0.0
      %818 = vmatprep.subr.mxu0 0.0
      %819 = vmatpush1.msra.mxu0 0.0
      %820 = vmatprep.subr.mxu0 0.0
      %821 = vmatpush1.msra.mxu0 0.0
      %822 = vmatprep.subr.mxu0 0.0
      %823 = vmatpush1.msra.mxu0 0.0
      %824 = vmatprep.subr.mxu0 0.0
      %825 = vmatpush1.msra.mxu0 0.0
      %826 = vmatprep.subr.mxu0 0.0
      %827 = vmatpush1.msra.mxu0 0.0
      %828 = vmatprep.subr.mxu0 0.0
      %829 = vmatpush1.msra.mxu0 0.0
      %830 = vmatprep.subr.mxu0 0.0
      %831 = vmatpush1.msra.mxu0 0.0
      %832 = vmatprep.subr.mxu0 0.0
      %833 = vmatpush1.msra.mxu0 0.0
      %834 = vmatprep.subr.mxu0 0.0
      %835 = vmatpush1.msra.mxu0 0.0
      %836 = vmatprep.subr.mxu0 0.0
      %837 = vmatpush1.msra.mxu0 0.0
      %838 = vmatprep.subr.mxu0 0.0
      %839 = vmatpush1.msra.mxu0 0.0
      %840 = vmatprep.subr.mxu0 0.0
      %841 = vmatpush1.msra.mxu0 0.0
      %842 = vmatprep.mubr.f32.mxu0 0.0
      %843 = vmatmul.mubr.f32.gmra.mrb[0].mxu0 %v773
      %v844 = vpop.f32.mrb[0].mxu0
      %v845 = vadd.f32 %v769, %v844
      %v846 = vpop.f32.mrb[0].mxu0
      %847 = vdwg.mxu0
      %v848 = vld [vmem:[#allocation4 + $0x2] sm:$0xff]
      %v849 = vld [vmem:[%s2 + $0x78] sm:$0xff]
      %v850 = vld [vmem:[%s2 + $0x80] sm:$0xff]
      %v851 = vld [vmem:[%s2 + $0x88] sm:$0xff]
      %v852 = vld [vmem:[%s2 + $0x90] sm:$0xff]
      %v853 = vld [vmem:[%s2 + $0x98] sm:$0xff]
      %v854 = vld [vmem:[%s2 + $0xa0] sm:$0xff]
      %v855 = vld [vmem:[%s2 + $0xa8] sm:$0xff]
      %v856 = vld [vmem:[%s2 + $0xb0] sm:$0xf]
      %v858 = vsel %vm667, %v848, 0
      %v861 = vsel %vm698, %v856, 0
      %863 = vmatprep.subr.mxu0 0.0
      %864 = vmatpush1.msra.mxu0 %v849
      %865 = vmatprep.subr.mxu0 0.0
      %866 = vmatpush1.msra.mxu0 %v850
      %867 = vmatprep.subr.mxu0 0.0
      %868 = vmatpush1.msra.mxu0 %v851
      %869 = vmatprep.subr.mxu0 0.0
      %870 = vmatpush1.msra.mxu0 %v852
      %871 = vmatprep.subr.mxu0 0.0
      %872 = vmatpush1.msra.mxu0 %v853
      %873 = vmatprep.subr.mxu0 0.0
      %874 = vmatpush1.msra.mxu0 %v854
      %875 = vmatprep.subr.mxu0 0.0
      %876 = vmatpush1.msra.mxu0 %v855
      %877 = vmatprep.subr.mxu0 0.0
      %878 = vmatpush1.msra.mxu0 %v861
      %879 = vmatprep.subr.mxu0 0.0
      %880 = vmatpush1.msra.mxu0 0.0
      %881 = vmatprep.subr.mxu0 0.0
      %882 = vmatpush1.msra.mxu0 0.0
      %883 = vmatprep.subr.mxu0 0.0
      %884 = vmatpush1.msra.mxu0 0.0
      %885 = vmatprep.subr.mxu0 0.0
      %886 = vmatpush1.msra.mxu0 0.0
      %887 = vmatprep.subr.mxu0 0.0
      %888 = vmatpush1.msra.mxu0 0.0
      %889 = vmatprep.subr.mxu0 0.0
      %890 = vmatpush1.msra.mxu0 0.0
      %891 = vmatprep.subr.mxu0 0.0
      %892 = vmatpush1.msra.mxu0 0.0
      %893 = vmatprep.subr.mxu0 0.0
      %894 = vmatpush1.msra.mxu0 0.0
      %895 = vmatprep.subr.mxu0 0.0
      %896 = vmatpush1.msra.mxu0 0.0
      %897 = vmatprep.subr.mxu0 0.0
      %898 = vmatpush1.msra.mxu0 0.0
      %899 = vmatprep.subr.mxu0 0.0
      %900 = vmatpush1.msra.mxu0 0.0
      %901 = vmatprep.subr.mxu0 0.0
      %902 = vmatpush1.msra.mxu0 0.0
      %903 = vmatprep.subr.mxu0 0.0
      %904 = vmatpush1.msra.mxu0 0.0
      %905 = vmatprep.subr.mxu0 0.0
      %906 = vmatpush1.msra.mxu0 0.0
      %907 = vmatprep.subr.mxu0 0.0
      %908 = vmatpush1.msra.mxu0 0.0
      %909 = vmatprep.subr.mxu0 0.0
      %910 = vmatpush1.msra.mxu0 0.0
      %911 = vmatprep.subr.mxu0 0.0
      %912 = vmatpush1.msra.mxu0 0.0
      %913 = vmatprep.subr.mxu0 0.0
      %914 = vmatpush1.msra.mxu0 0.0
      %915 = vmatprep.subr.mxu0 0.0
      %916 = vmatpush1.msra.mxu0 0.0
      %917 = vmatprep.subr.mxu0 0.0
      %918 = vmatpush1.msra.mxu0 0.0
      %919 = vmatprep.subr.mxu0 0.0
      %920 = vmatpush1.msra.mxu0 0.0
      %921 = vmatprep.subr.mxu0 0.0
      %922 = vmatpush1.msra.mxu0 0.0
      %923 = vmatprep.subr.mxu0 0.0
      %924 = vmatpush1.msra.mxu0 0.0
      %925 = vmatprep.subr.mxu0 0.0
      %926 = vmatpush1.msra.mxu0 0.0
      %927 = vmatprep.mubr.f32.mxu0 0.0
      %928 = vmatmul.mubr.f32.gmra.mrb[0].mxu0 %v858
      %v929 = vpop.f32.mrb[0].mxu0
      %v930 = vadd.f32 0.0, %v929
      %v931 = vpop.f32.mrb[0].mxu0
      %932 = vdwg.mxu0
      %v933 = vadd.f32 %v845, %v930
      %v934 = vmax.f32 %v933, 0.0
      %936 = vrot.lane.b32.xlu0 %v934, 64
      %v937 = vpop.permute.xlu0 %936
      %v939 = vmax.f32 %v934, %v937
      %vm940 = vcmask 523264
      %941 = vst.msk [vmem:[#allocation5] sm:$0xff] %vm940, %v939
      %v942 = vld [vmem:[#allocation5] ss:$2 sm:$0xf]
      %s943 = scalar_lea.vmem [#allocation5], 1
      %v944 = vld [vmem:[%s943] ss:$2 sm:$0xf]
      %v945 = vmax.f32 %v942, %v944
      %vm946 = vcmask 783360
      %947 = vst.msk [vmem:[#allocation6] sm:$0x3f] %vm946, 0.0
      %949 = vrot.lane.b32.xlu0 %v945, 16
      %v950 = vpop.permute.xlu0 %949
      %vm952 = vcmask 650368
      %953 = vst.msk [vmem:[#allocation6 + $0x1] sm:$0xf] %vm952, %v950
      %v954 = vld [vmem:[#allocation6] sm:$0xf]
      %v955 = vld [vmem:[%s3] sm:$0xff]
      %v956 = vld [vmem:[%s3 + $0x8] sm:$0xff]
      %v957 = vld [vmem:[%s3 + $0x10] sm:$0xff]
      %v958 = vld [vmem:[%s3 + $0x18] sm:$0xff]
      %v959 = vld [vmem:[%s3 + $0x20] sm:$0xff]
      %v960 = vld [vmem:[%s3 + $0x28] sm:$0xff]
      %v961 = vld [vmem:[%s3 + $0x30] sm:$0xff]
      %v962 = vld [vmem:[%s3 + $0x38] sm:$0xff]
      %v963 = vld [vmem:[%s3 + $0x40] sm:$0xff]
      %v964 = vld [vmem:[%s3 + $0x48] sm:$0xff]
      %v965 = vld [vmem:[%s3 + $0x50] sm:$0xff]
      %v966 = vld [vmem:[%s3 + $0x58] sm:$0xff]
      %v967 = vld [vmem:[#allocation6 + $0x1] sm:$0xf]
      %v968 = vld [vmem:[%s3 + $0x60] sm:$0xff]
      %v969 = vld [vmem:[%s3 + $0x68] sm:$0xff]
      %v970 = vld [vmem:[%s3 + $0x70] sm:$0xff]
      %v971 = vld [vmem:[%s3 + $0x78] sm:$0xff]
      %v972 = vld [vmem:[%s3 + $0x80] sm:$0xff]
      %v973 = vld [vmem:[%s3 + $0x88] sm:$0xff]
      %v974 = vld [vmem:[%s3 + $0x90] sm:$0xff]
      %v975 = vld [vmem:[%s3 + $0x98] sm:$0xff]
      %v976 = vld [vmem:[%s3 + $0xa0] sm:$0xff]
      %v977 = vld [vmem:[%s3 + $0xa8] sm:$0xff]
      %v978 = vld [vmem:[%s3 + $0xb0] sm:$0xff]
      %v979 = vld [vmem:[%s3 + $0xb8] sm:$0xff]
      %vm980 = vcmask 785408
      %v982 = vsel %vm980, %v967, 0
      %984 = vmatprep.subr.mxu0 0.0
      %985 = vmatpush1.msra.mxu0 %v968
      %986 = vmatprep.subr.mxu0 0.0
      %987 = vmatpush1.msra.mxu0 %v969
      %988 = vmatprep.subr.mxu0 0.0
      %989 = vmatpush1.msra.mxu0 %v970
      %990 = vmatprep.subr.mxu0 0.0
      %991 = vmatpush1.msra.mxu0 %v971
      %992 = vmatprep.subr.mxu0 0.0
      %993 = vmatpush1.msra.mxu0 %v972
      %994 = vmatprep.subr.mxu0 0.0
      %995 = vmatpush1.msra.mxu0 %v973
      %996 = vmatprep.subr.mxu0 0.0
      %997 = vmatpush1.msra.mxu0 %v974
      %998 = vmatprep.subr.mxu0 0.0
      %999 = vmatpush1.msra.mxu0 %v975
      %1000 = vmatprep.subr.mxu0 0.0
      %1001 = vmatpush1.msra.mxu0 %v976
      %1002 = vmatprep.subr.mxu0 0.0
      %1003 = vmatpush1.msra.mxu0 %v977
      %1004 = vmatprep.subr.mxu0 0.0
      %1005 = vmatpush1.msra.mxu0 %v978
      %1006 = vmatprep.subr.mxu0 0.0
      %1007 = vmatpush1.msra.mxu0 %v979
      %1008 = vmatprep.subr.mxu0 0.0
      %1009 = vmatpush1.msra.mxu0 0.0
      %1010 = vmatprep.subr.mxu0 0.0
      %1011 = vmatpush1.msra.mxu0 0.0
      %1012 = vmatprep.subr.mxu0 0.0
      %1013 = vmatpush1.msra.mxu0 0.0
      %1014 = vmatprep.subr.mxu0 0.0
      %1015 = vmatpush1.msra.mxu0 0.0
      %1016 = vmatprep.subr.mxu0 0.0
      %1017 = vmatpush1.msra.mxu0 0.0
      %1018 = vmatprep.subr.mxu0 0.0
      %1019 = vmatpush1.msra.mxu0 0.0
      %1020 = vmatprep.subr.mxu0 0.0
      %1021 = vmatpush1.msra.mxu0 0.0
      %1022 = vmatprep.subr.mxu0 0.0
      %1023 = vmatpush1.msra.mxu0 0.0
      %1024 = vmatprep.subr.mxu0 0.0
      %1025 = vmatpush1.msra.mxu0 0.0
      %1026 = vmatprep.subr.mxu0 0.0
      %1027 = vmatpush1.msra.mxu0 0.0
      %1028 = vmatprep.subr.mxu0 0.0
      %1029 = vmatpush1.msra.mxu0 0.0
      %1030 = vmatprep.subr.mxu0 0.0
      %1031 = vmatpush1.msra.mxu0 0.0
      %1032 = vmatprep.subr.mxu0 0.0
      %1033 = vmatpush1.msra.mxu0 0.0
      %1034 = vmatprep.subr.mxu0 0.0
      %1035 = vmatpush1.msra.mxu0 0.0
      %1036 = vmatprep.subr.mxu0 0.0
      %1037 = vmatpush1.msra.mxu0 0.0
      %1038 = vmatprep.subr.mxu0 0.0
      %1039 = vmatpush1.msra.mxu0 0.0
      %1040 = vmatprep.subr.mxu0 0.0
      %1041 = vmatpush1.msra.mxu0 0.0
      %1042 = vmatprep.subr.mxu0 0.0
      %1043 = vmatpush1.msra.mxu0 0.0
      %1044 = vmatprep.subr.mxu0 0.0
      %1045 = vmatpush1.msra.mxu0 0.0
      %1046 = vmatprep.subr.mxu0 0.0
      %1047 = vmatpush1.msra.mxu0 0.0
      %1048 = vmatprep.mubr.f32.mxu0 0.0
      %1049 = vmatmul.mubr.f32.gmra.mrb[0].mxu0 %v982
      %v1050 = vpop.f32.mrb[0].mxu0
      %v1051 = vadd.f32 0.0, %v1050
      %v1052 = vpop.f32.mrb[0].mxu0
      %1053 = vdwg.mxu0
      %v1055 = vsel %vm980, %v954, 0
      %1057 = vmatprep.subr.mxu0 0.0
      %1058 = vmatpush1.msra.mxu0 %v955
      %1059 = vmatprep.subr.mxu0 0.0
      %1060 = vmatpush1.msra.mxu0 %v956
      %1061 = vmatprep.subr.mxu0 0.0
      %1062 = vmatpush1.msra.mxu0 %v957
      %1063 = vmatprep.subr.mxu0 0.0
      %1064 = vmatpush1.msra.mxu0 %v958
      %1065 = vmatprep.subr.mxu0 0.0
      %1066 = vmatpush1.msra.mxu0 %v959
      %1067 = vmatprep.subr.mxu0 0.0
      %1068 = vmatpush1.msra.mxu0 %v960
      %1069 = vmatprep.subr.mxu0 0.0
      %1070 = vmatpush1.msra.mxu0 %v961
      %1071 = vmatprep.subr.mxu0 0.0
      %1072 = vmatpush1.msra.mxu0 %v962
      %1073 = vmatprep.subr.mxu0 0.0
      %1074 = vmatpush1.msra.mxu0 %v963
      %1075 = vmatprep.subr.mxu0 0.0
      %1076 = vmatpush1.msra.mxu0 %v964
      %1077 = vmatprep.subr.mxu0 0.0
      %1078 = vmatpush1.msra.mxu0 %v965
      %1079 = vmatprep.subr.mxu0 0.0
      %1080 = vmatpush1.msra.mxu0 %v966
      %1081 = vmatprep.subr.mxu0 0.0
      %1082 = vmatpush1.msra.mxu0 0.0
      %1083 = vmatprep.subr.mxu0 0.0
      %1084 = vmatpush1.msra.mxu0 0.0
      %1085 = vmatprep.subr.mxu0 0.0
      %1086 = vmatpush1.msra.mxu0 0.0
      %1087 = vmatprep.subr.mxu0 0.0
      %1088 = vmatpush1.msra.mxu0 0.0
      %1089 = vmatprep.subr.mxu0 0.0
      %1090 = vmatpush1.msra.mxu0 0.0
      %1091 = vmatprep.subr.mxu0 0.0
      %1092 = vmatpush1.msra.mxu0 0.0
      %1093 = vmatprep.subr.mxu0 0.0
      %1094 = vmatpush1.msra.mxu0 0.0
      %1095 = vmatprep.subr.mxu0 0.0
      %1096 = vmatpush1.msra.mxu0 0.0
      %1097 = vmatprep.subr.mxu0 0.0
      %1098 = vmatpush1.msra.mxu0 0.0
      %1099 = vmatprep.subr.mxu0 0.0
      %1100 = vmatpush1.msra.mxu0 0.0
      %1101 = vmatprep.subr.mxu0 0.0
      %1102 = vmatpush1.msra.mxu0 0.0
      %1103 = vmatprep.subr.mxu0 0.0
      %1104 = vmatpush1.msra.mxu0 0.0
      %1105 = vmatprep.subr.mxu0 0.0
      %1106 = vmatpush1.msra.mxu0 0.0
      %1107 = vmatprep.subr.mxu0 0.0
      %1108 = vmatpush1.msra.mxu0 0.0
      %1109 = vmatprep.subr.mxu0 0.0
      %1110 = vmatpush1.msra.mxu0 0.0
      %1111 = vmatprep.subr.mxu0 0.0
      %1112 = vmatpush1.msra.mxu0 0.0
      %1113 = vmatprep.subr.mxu0 0.0
      %1114 = vmatpush1.msra.mxu0 0.0
      %1115 = vmatprep.subr.mxu0 0.0
      %1116 = vmatpush1.msra.mxu0 0.0
      %1117 = vmatprep.subr.mxu0 0.0
      %1118 = vmatpush1.msra.mxu0 0.0
      %1119 = vmatprep.subr.mxu0 0.0
      %1120 = vmatpush1.msra.mxu0 0.0
      %1121 = vmatprep.mubr.f32.mxu0 0.0
      %1122 = vmatmul.mubr.f32.gmra.mrb[0].mxu0 %v1055
      %v1123 = vpop.f32.mrb[0].mxu0
      %v1124 = vadd.f32 %v1051, %v1123
      %v1125 = vpop.f32.mrb[0].mxu0
      %1126 = vdwg.mxu0
      %v1127 = vld [vmem:[#allocation6 + $0x2] sm:$0xf]
      %v1128 = vld [vmem:[%s3 + $0xc0] sm:$0xff]
      %v1129 = vld [vmem:[%s3 + $0xc8] sm:$0xff]
      %v1130 = vld [vmem:[%s3 + $0xd0] sm:$0xff]
      %v1131 = vld [vmem:[%s3 + $0xd8] sm:$0xff]
      %v1132 = vld [vmem:[%s3 + $0xe0] sm:$0xff]
      %v1133 = vld [vmem:[%s3 + $0xe8] sm:$0xff]
      %v1134 = vld [vmem:[%s3 + $0xf0] sm:$0xff]
      %v1135 = vld [vmem:[%s3 + $0xf8] sm:$0xff]
      %v1136 = vld [vmem:[%s3 + $0x100] sm:$0xff]
      %v1137 = vld [vmem:[%s3 + $0x108] sm:$0xff]
      %v1138 = vld [vmem:[%s3 + $0x110] sm:$0xff]
      %v1139 = vld [vmem:[%s3 + $0x118] sm:$0xff]
      %v1141 = vsel %vm980, %v1127, 0
      %1143 = vmatprep.subr.mxu0 0.0
      %1144 = vmatpush1.msra.mxu0 %v1128
      %1145 = vmatprep.subr.mxu0 0.0
      %1146 = vmatpush1.msra.mxu0 %v1129
      %1147 = vmatprep.subr.mxu0 0.0
      %1148 = vmatpush1.msra.mxu0 %v1130
      %1149 = vmatprep.subr.mxu0 0.0
      %1150 = vmatpush1.msra.mxu0 %v1131
      %1151 = vmatprep.subr.mxu0 0.0
      %1152 = vmatpush1.msra.mxu0 %v1132
      %1153 = vmatprep.subr.mxu0 0.0
      %1154 = vmatpush1.msra.mxu0 %v1133
      %1155 = vmatprep.subr.mxu0 0.0
      %1156 = vmatpush1.msra.mxu0 %v1134
      %1157 = vmatprep.subr.mxu0 0.0
      %1158 = vmatpush1.msra.mxu0 %v1135
      %1159 = vmatprep.subr.mxu0 0.0
      %1160 = vmatpush1.msra.mxu0 %v1136
      %1161 = vmatprep.subr.mxu0 0.0
      %1162 = vmatpush1.msra.mxu0 %v1137
      %1163 = vmatprep.subr.mxu0 0.0
      %1164 = vmatpush1.msra.mxu0 %v1138
      %1165 = vmatprep.subr.mxu0 0.0
      %1166 = vmatpush1.msra.mxu0 %v1139
      %1167 = vmatprep.subr.mxu0 0.0
      %1168 = vmatpush1.msra.mxu0 0.0
      %1169 = vmatprep.subr.mxu0 0.0
      %1170 = vmatpush1.msra.mxu0 0.0
      %1171 = vmatprep.subr.mxu0 0.0
      %1172 = vmatpush1.msra.mxu0 0.0
      %1173 = vmatprep.subr.mxu0 0.0
      %1174 = vmatpush1.msra.mxu0 0.0
      %1175 = vmatprep.subr.mxu0 0.0
      %1176 = vmatpush1.msra.mxu0 0.0
      %1177 = vmatprep.subr.mxu0 0.0
      %1178 = vmatpush1.msra.mxu0 0.0
      %1179 = vmatprep.subr.mxu0 0.0
      %1180 = vmatpush1.msra.mxu0 0.0
      %1181 = vmatprep.subr.mxu0 0.0
      %1182 = vmatpush1.msra.mxu0 0.0
      %1183 = vmatprep.subr.mxu0 0.0
      %1184 = vmatpush1.msra.mxu0 0.0
      %1185 = vmatprep.subr.mxu0 0.0
      %1186 = vmatpush1.msra.mxu0 0.0
      %1187 = vmatprep.subr.mxu0 0.0
      %1188 = vmatpush1.msra.mxu0 0.0
      %1189 = vmatprep.subr.mxu0 0.0
      %1190 = vmatpush1.msra.mxu0 0.0
      %1191 = vmatprep.subr.mxu0 0.0
      %1192 = vmatpush1.msra.mxu0 0.0
      %1193 = vmatprep.subr.mxu0 0.0
      %1194 = vmatpush1.msra.mxu0 0.0
      %1195 = vmatprep.subr.mxu0 0.0
      %1196 = vmatpush1.msra.mxu0 0.0
      %1197 = vmatprep.subr.mxu0 0.0
      %1198 = vmatpush1.msra.mxu0 0.0
      %1199 = vmatprep.subr.mxu0 0.0
      %1200 = vmatpush1.msra.mxu0 0.0
      %1201 = vmatprep.subr.mxu0 0.0
      %1202 = vmatpush1.msra.mxu0 0.0
      %1203 = vmatprep.subr.mxu0 0.0
      %1204 = vmatpush1.msra.mxu0 0.0
      %1205 = vmatprep.subr.mxu0 0.0
      %1206 = vmatpush1.msra.mxu0 0.0
      %1207 = vmatprep.mubr.f32.mxu0 0.0
      %1208 = vmatmul.mubr.f32.gmra.mrb[0].mxu0 %v1141
      %v1209 = vpop.f32.mrb[0].mxu0
      %v1210 = vadd.f32 0.0, %v1209
      %v1211 = vpop.f32.mrb[0].mxu0
      %1212 = vdwg.mxu0
      %v1213 = vadd.f32 %v1124, %v1210
      %v1214 = vmax.f32 %v1213, 0.0
      %1215 = vst [vmem:[#allocation7] sm:$0xff] 0.0
      %1216 = vst.msk [vmem:[#allocation7 + $0x8] sm:$0xff] %vm660, 0.0
      %1217 = vst [vmem:[#allocation7 + $0x10] sm:$0x7] 0.0
      %vm1218 = vcmask 387072
      %1219 = vst.msk [vmem:[#allocation7 + $0x18] sm:$0x7] %vm1218, 0.0
      %v1220 = vld [vmem:[%s5] sm:$0xff]
      %v1221 = vld [vmem:[%s5 + $0x8] sm:$0xff]
      %v1222 = vld [vmem:[%s5 + $0x10] sm:$0xff]
      %v1223 = vld [vmem:[%s5 + $0x18] sm:$0xff]
      %v1224 = vld [vmem:[%s5 + $0x20] sm:$0xff]
      %v1225 = vld [vmem:[%s5 + $0x28] sm:$0xff]
      %v1226 = vld [vmem:[%s5 + $0x30] sm:$0xff]
      %v1227 = vld [vmem:[%s5 + $0x38] sm:$0xff]
      %v1229 = vsel %vm940, %v1214, 0
      %1231 = vmatprep.subr.mxu0 0.0
      %1232 = vmatpush1.msra.mxu0 %v1220
      %1233 = vmatprep.subr.mxu0 0.0
      %1234 = vmatpush1.msra.mxu0 %v1221
      %1235 = vmatprep.subr.mxu0 0.0
      %1236 = vmatpush1.msra.mxu0 %v1222
      %1237 = vmatprep.subr.mxu0 0.0
      %1238 = vmatpush1.msra.mxu0 %v1223
      %1239 = vmatprep.subr.mxu0 0.0
      %1240 = vmatpush1.msra.mxu0 %v1224
      %1241 = vmatprep.subr.mxu0 0.0
      %1242 = vmatpush1.msra.mxu0 %v1225
      %1243 = vmatprep.subr.mxu0 0.0
      %1244 = vmatpush1.msra.mxu0 %v1226
      %1245 = vmatprep.subr.mxu0 0.0
      %1246 = vmatpush1.msra.mxu0 %v1227
      %1247 = vmatprep.subr.mxu0 0.0
      %1248 = vmatpush1.msra.mxu0 0.0
      %1249 = vmatprep.subr.mxu0 0.0
      %1250 = vmatpush1.msra.mxu0 0.0
      %1251 = vmatprep.subr.mxu0 0.0
      %1252 = vmatpush1.msra.mxu0 0.0
      %1253 = vmatprep.subr.mxu0 0.0
      %1254 = vmatpush1.msra.mxu0 0.0
      %1255 = vmatprep.subr.mxu0 0.0
      %1256 = vmatpush1.msra.mxu0 0.0
      %1257 = vmatprep.subr.mxu0 0.0
      %1258 = vmatpush1.msra.mxu0 0.0
      %1259 = vmatprep.subr.mxu0 0.0
      %1260 = vmatpush1.msra.mxu0 0.0
      %1261 = vmatprep.subr.mxu0 0.0
      %1262 = vmatpush1.msra.mxu0 0.0
      %1263 = vmatprep.subr.mxu0 0.0
      %1264 = vmatpush1.msra.mxu0 0.0
      %1265 = vmatprep.subr.mxu0 0.0
      %1266 = vmatpush1.msra.mxu0 0.0
      %1267 = vmatprep.subr.mxu0 0.0
      %1268 = vmatpush1.msra.mxu0 0.0
      %1269 = vmatprep.subr.mxu0 0.0
      %1270 = vmatpush1.msra.mxu0 0.0
      %1271 = vmatprep.subr.mxu0 0.0
      %1272 = vmatpush1.msra.mxu0 0.0
      %1273 = vmatprep.subr.mxu0 0.0
      %1274 = vmatpush1.msra.mxu0 0.0
      %1275 = vmatprep.subr.mxu0 0.0
      %1276 = vmatpush1.msra.mxu0 0.0
      %1277 = vmatprep.subr.mxu0 0.0
      %1278 = vmatpush1.msra.mxu0 0.0
      %1279 = vmatprep.subr.mxu0 0.0
      %1280 = vmatpush1.msra.mxu0 0.0
      %1281 = vmatprep.subr.mxu0 0.0
      %1282 = vmatpush1.msra.mxu0 0.0
      %1283 = vmatprep.subr.mxu0 0.0
      %1284 = vmatpush1.msra.mxu0 0.0
      %1285 = vmatprep.subr.mxu0 0.0
      %1286 = vmatpush1.msra.mxu0 0.0
      %1287 = vmatprep.subr.mxu0 0.0
      %1288 = vmatpush1.msra.mxu0 0.0
      %1289 = vmatprep.subr.mxu0 0.0
      %1290 = vmatpush1.msra.mxu0 0.0
      %1291 = vmatprep.subr.mxu0 0.0
      %1292 = vmatpush1.msra.mxu0 0.0
      %1293 = vmatprep.subr.mxu0 0.0
      %1294 = vmatpush1.msra.mxu0 0.0
      %1295 = vmatprep.mubr.f32.mxu0 0.0
      %1296 = vmatmul.mubr.f32.gmra.mrb[0].mxu0 %v1229
      %v1297 = vpop.f32.mrb[0].mxu0
      %v1298 = vadd.f32 0.0, %v1297
      %v1299 = vpop.f32.mrb[0].mxu0
      %1300 = vdwg.mxu0
      %1302 = vrot.lane.b32.xlu0 %v1298, 16
      %v1303 = vpop.permute.xlu0 %1302
      %vm1305 = vcmask 1040512
      %1306 = vst.msk [vmem:[#allocation7 + $0x1] sm:$0x1] %vm1305, %v1303
      %vm1307 = vcmask 122880
      %1308 = vst.msk [vmem:[#allocation7 + $0x9] sm:$0x1] %vm1307, %v1303
      %v1309 = vrot.slane %v1298, 1
      %1310 = vrot.lane.b32.xlu0 %v1309, 16
      %v1311 = vpop.permute.xlu0 %1310
      %1313 = vst.msk [vmem:[#allocation7 + $0x3] sm:$0x1] %vm1305, %v1311
      %1314 = vst.msk [vmem:[#allocation7 + $0xb] sm:$0x1] %vm1307, %v1311
      %v1315 = vrot.slane %v1298, 2
      %1316 = vrot.lane.b32.xlu0 %v1315, 16
      %v1317 = vpop.permute.xlu0 %1316
      %1319 = vst.msk [vmem:[#allocation7 + $0x5] sm:$0x1] %vm1305, %v1317
      %1320 = vst.msk [vmem:[#allocation7 + $0xd] sm:$0x1] %vm1307, %v1317
      %v1321 = vrot.slane %v1298, 3
      %1322 = vrot.lane.b32.xlu0 %v1321, 16
      %v1323 = vpop.permute.xlu0 %1322
      %1325 = vst.msk [vmem:[#allocation7 + $0x7] sm:$0x1] %vm1305, %v1323
      %1326 = vst.msk [vmem:[#allocation7 + $0xf] sm:$0x1] %vm1307, %v1323
      %v1327 = vld [vmem:[%s6] sm:$0xff]
      %v1328 = vld [vmem:[%s6 + $0x8] sm:$0xff]
      %v1329 = vld [vmem:[%s6 + $0x10] sm:$0xff]
      %v1330 = vld [vmem:[%s6 + $0x18] sm:$0xff]
      %v1331 = vld [vmem:[%s6 + $0x20] sm:$0xff]
      %v1332 = vld [vmem:[%s6 + $0x28] sm:$0xff]
      %v1333 = vld [vmem:[%s6 + $0x30] sm:$0xff]
      %v1334 = vld [vmem:[%s6 + $0x38] sm:$0xff]
      %1335 = vmatprep.subr.mxu0 0.0
      %1336 = vmatpush1.msra.mxu0 %v1327
      %1337 = vmatprep.subr.mxu0 0.0
      %1338 = vmatpush1.msra.mxu0 %v1328
      %1339 = vmatprep.subr.mxu0 0.0
      %1340 = vmatpush1.msra.mxu0 %v1329
      %1341 = vmatprep.subr.mxu0 0.0
      %1342 = vmatpush1.msra.mxu0 %v1330
      %1343 = vmatprep.subr.mxu0 0.0
      %1344 = vmatpush1.msra.mxu0 %v1331
      %1345 = vmatprep.subr.mxu0 0.0
      %1346 = vmatpush1.msra.mxu0 %v1332
      %1347 = vmatprep.subr.mxu0 0.0
      %1348 = vmatpush1.msra.mxu0 %v1333
      %1349 = vmatprep.subr.mxu0 0.0
      %1350 = vmatpush1.msra.mxu0 %v1334
      %1351 = vmatprep.subr.mxu0 0.0
      %1352 = vmatpush1.msra.mxu0 0.0
      %1353 = vmatprep.subr.mxu0 0.0
      %1354 = vmatpush1.msra.mxu0 0.0
      %1355 = vmatprep.subr.mxu0 0.0
      %1356 = vmatpush1.msra.mxu0 0.0
      %1357 = vmatprep.subr.mxu0 0.0
      %1358 = vmatpush1.msra.mxu0 0.0
      %1359 = vmatprep.subr.mxu0 0.0
      %1360 = vmatpush1.msra.mxu0 0.0
      %1361 = vmatprep.subr.mxu0 0.0
      %1362 = vmatpush1.msra.mxu0 0.0
      %1363 = vmatprep.subr.mxu0 0.0
      %1364 = vmatpush1.msra.mxu0 0.0
      %1365 = vmatprep.subr.mxu0 0.0
      %1366 = vmatpush1.msra.mxu0 0.0
      %1367 = vmatprep.subr.mxu0 0.0
      %1368 = vmatpush1.msra.mxu0 0.0
      %1369 = vmatprep.subr.mxu0 0.0
      %1370 = vmatpush1.msra.mxu0 0.0
      %1371 = vmatprep.subr.mxu0 0.0
      %1372 = vmatpush1.msra.mxu0 0.0
      %1373 = vmatprep.subr.mxu0 0.0
      %1374 = vmatpush1.msra.mxu0 0.0
      %1375 = vmatprep.subr.mxu0 0.0
      %1376 = vmatpush1.msra.mxu0 0.0
      %1377 = vmatprep.subr.mxu0 0.0
      %1378 = vmatpush1.msra.mxu0 0.0
      %1379 = vmatprep.subr.mxu0 0.0
      %1380 = vmatpush1.msra.mxu0 0.0
      %1381 = vmatprep.subr.mxu0 0.0
      %1382 = vmatpush1.msra.mxu0 0.0
      %1383 = vmatprep.subr.mxu0 0.0
      %1384 = vmatpush1.msra.mxu0 0.0
      %1385 = vmatprep.subr.mxu0 0.0
      %1386 = vmatpush1.msra.mxu0 0.0
      %1387 = vmatprep.subr.mxu0 0.0
      %1388 = vmatpush1.msra.mxu0 0.0
      %1389 = vmatprep.subr.mxu0 0.0
      %1390 = vmatpush1.msra.mxu0 0.0
      %1391 = vmatprep.subr.mxu0 0.0
      %1392 = vmatpush1.msra.mxu0 0.0
      %1393 = vmatprep.subr.mxu0 0.0
      %1394 = vmatpush1.msra.mxu0 0.0
      %1395 = vmatprep.subr.mxu0 0.0
      %1396 = vmatpush1.msra.mxu0 0.0
      %1397 = vmatprep.subr.mxu0 0.0
      %1398 = vmatpush1.msra.mxu0 0.0
      %1399 = vmatprep.mubr.f32.mxu0 0.0
      %1400 = vmatmul.mubr.f32.gmra.mrb[0].mxu0 %v1229
      %v1401 = vpop.f32.mrb[0].mxu0
      %v1402 = vadd.f32 0.0, %v1401
      %v1403 = vpop.f32.mrb[0].mxu0
      %1404 = vdwg.mxu0
      %1406 = vrot.lane.b32.xlu0 %v1402, 16
      %v1407 = vpop.permute.xlu0 %1406
      %1409 = vst.msk [vmem:[#allocation7 + $0x2] sm:$0x1] %vm1305, %v1407
      %1410 = vst.msk [vmem:[#allocation7 + $0xa] sm:$0x1] %vm1307, %v1407
      %v1411 = vrot.slane %v1402, 1
      %1412 = vrot.lane.b32.xlu0 %v1411, 16
      %v1413 = vpop.permute.xlu0 %1412
      %1415 = vst.msk [vmem:[#allocation7 + $0x4] sm:$0x1] %vm1305, %v1413
      %1416 = vst.msk [vmem:[#allocation7 + $0xc] sm:$0x1] %vm1307, %v1413
      %v1417 = vrot.slane %v1402, 2
      %1418 = vrot.lane.b32.xlu0 %v1417, 16
      %v1419 = vpop.permute.xlu0 %1418
      %1421 = vst.msk [vmem:[#allocation7 + $0x6] sm:$0x1] %vm1305, %v1419
      %1422 = vst.msk [vmem:[#allocation7 + $0xe] sm:$0x1] %vm1307, %v1419
      %v1423 = vrot.slane %v1402, 3
      %1424 = vrot.lane.b32.xlu0 %v1423, 16
      %v1425 = vpop.permute.xlu0 %1424
      %1427 = vst.msk [vmem:[#allocation7 + $0x10] sm:$0x1] %vm1305, %v1425
      %1428 = vst.msk [vmem:[#allocation7 + $0x18] sm:$0x1] %vm1307, %v1425
      %v1429 = vld [vmem:[#allocation7] sm:$0xff]
      %v1430 = vld [vmem:[#allocation7 + $0x8] sm:$0xff]
      %v1431 = vld [vmem:[#allocation7 + $0x10] sm:$0x1]
      %v1432 = vld [vmem:[#allocation7 + $0x18] sm:$0x1]
      %v1433 = vld [vmem:[%s4] sm:$0xff]
      %v1434 = vld [vmem:[%s4 + $0x8] sm:$0xff]
      %v1435 = vld [vmem:[%s4 + $0x10] sm:$0xff]
      %v1436 = vld [vmem:[%s4 + $0x18] sm:$0xff]
      %v1437 = vld [vmem:[%s4 + $0x20] sm:$0xff]
      %v1438 = vld [vmem:[%s4 + $0x28] sm:$0xff]
      %v1439 = vld [vmem:[%s4 + $0x30] sm:$0xff]
      %v1440 = vld [vmem:[%s4 + $0x38] sm:$0xff]
      %v1441 = vld [vmem:[%s4 + $0x40] sm:$0xff]
      %v1442 = vld [vmem:[%s4 + $0x48] sm:$0xff]
      %v1443 = vld [vmem:[%s4 + $0x50] sm:$0xff]
      %v1444 = vld [vmem:[%s4 + $0x58] sm:$0xff]
      %v1445 = vld [vmem:[%s4 + $0x60] sm:$0xff]
      %v1446 = vld [vmem:[%s4 + $0x68] sm:$0xff]
      %v1447 = vld [vmem:[%s4 + $0x70] sm:$0xff]
      %v1448 = vld [vmem:[%s4 + $0x78] sm:$0xff]
      %v1449 = vld [vmem:[%s4 + $0x80] sm:$0xff]
      %v1450 = vld [vmem:[%s4 + $0x88] sm:$0xff]
      %v1451 = vld [vmem:[%s4 + $0x90] sm:$0xff]
      %v1452 = vld [vmem:[%s4 + $0x98] sm:$0xff]
      %v1453 = vld [vmem:[%s4 + $0xa0] sm:$0xff]
      %v1454 = vld [vmem:[%s4 + $0xa8] sm:$0xff]
      %v1455 = vld [vmem:[#allocation7] sm:$0xfe]
      %v1456 = vld [vmem:[#allocation7 + $0x8] sm:$0xfe]
      %v1457 = vld [vmem:[#allocation7 + $0x10] sm:$0x3]
      %v1458 = vld [vmem:[#allocation7 + $0x18] sm:$0x3]
      %v1459 = vld [vmem:[%s4 + $0xb0] sm:$0xff]
      %v1460 = vld [vmem:[%s4 + $0xb8] sm:$0xff]
      %v1461 = vld [vmem:[%s4 + $0xc0] sm:$0xff]
      %v1462 = vld [vmem:[%s4 + $0xc8] sm:$0xff]
      %v1463 = vld [vmem:[%s4 + $0xd0] sm:$0xff]
      %v1464 = vld [vmem:[%s4 + $0xd8] sm:$0xff]
      %v1465 = vld [vmem:[%s4 + $0xe0] sm:$0xff]
      %v1466 = vld [vmem:[%s4 + $0xe8] sm:$0xff]
      %v1467 = vld [vmem:[%s4 + $0xf0] sm:$0xff]
      %v1468 = vld [vmem:[%s4 + $0xf8] sm:$0xff]
      %v1469 = vld [vmem:[%s4 + $0x100] sm:$0xff]
      %v1470 = vld [vmem:[%s4 + $0x108] sm:$0xff]
      %v1471 = vld [vmem:[%s4 + $0x110] sm:$0xff]
      %v1472 = vld [vmem:[%s4 + $0x118] sm:$0xff]
      %v1473 = vld [vmem:[%s4 + $0x120] sm:$0xff]
      %v1474 = vld [vmem:[%s4 + $0x128] sm:$0xff]
      %v1475 = vld [vmem:[%s4 + $0x130] sm:$0xff]
      %v1476 = vld [vmem:[%s4 + $0x138] sm:$0xff]
      %v1477 = vld [vmem:[%s4 + $0x140] sm:$0xff]
      %v1478 = vld [vmem:[%s4 + $0x148] sm:$0xff]
      %v1479 = vld [vmem:[%s4 + $0x150] sm:$0xff]
      %v1480 = vld [vmem:[%s4 + $0x158] sm:$0xff]
      %vm1485 = vcmask 1046528
      %v1486 = vrot.slane %v1455, 1
      %v1487 = vrot.slane %v1457, 1
      %v1488 = vsel %vm1485, %v1486, %v1487
      %v1489 = vrot.slane %v1456, 1
      %v1490 = vrot.slane %v1458, 1
      %v1491 = vsel %vm1485, %v1489, %v1490
      %v1494 = vsel %vm660, %v1491, 0
      %v1496 = vsel %vm660, %v1490, 0
      %1498 = vmatprep.subr.mxu0 0.0
      %1499 = vmatpush1.msra.mxu0 %v1459
      %1500 = vmatprep.subr.mxu0 0.0
      %1501 = vmatpush1.msra.mxu0 %v1460
      %1502 = vmatprep.subr.mxu0 0.0
      %1503 = vmatpush1.msra.mxu0 %v1461
      %1504 = vmatprep.subr.mxu0 0.0
      %1505 = vmatpush1.msra.mxu0 %v1462
      %1506 = vmatprep.subr.mxu0 0.0
      %1507 = vmatpush1.msra.mxu0 %v1463
      %1508 = vmatprep.subr.mxu0 0.0
      %1509 = vmatpush1.msra.mxu0 %v1464
      %1510 = vmatprep.subr.mxu0 0.0
      %1511 = vmatpush1.msra.mxu0 %v1465
      %1512 = vmatprep.subr.mxu0 0.0
      %1513 = vmatpush1.msra.mxu0 %v1466
      %1514 = vmatprep.subr.mxu0 0.0
      %1515 = vmatpush1.msra.mxu0 %v1467
      %1516 = vmatprep.subr.mxu0 0.0
      %1517 = vmatpush1.msra.mxu0 %v1468
      %1518 = vmatprep.subr.mxu0 0.0
      %1519 = vmatpush1.msra.mxu0 %v1469
      %1520 = vmatprep.subr.mxu0 0.0
      %1521 = vmatpush1.msra.mxu0 %v1470
      %1522 = vmatprep.subr.mxu0 0.0
      %1523 = vmatpush1.msra.mxu0 %v1471
      %1524 = vmatprep.subr.mxu0 0.0
      %1525 = vmatpush1.msra.mxu0 %v1472
      %1526 = vmatprep.subr.mxu0 0.0
      %1527 = vmatpush1.msra.mxu0 %v1473
      %1528 = vmatprep.subr.mxu0 0.0
      %1529 = vmatpush1.msra.mxu0 %v1474
      %1530 = vmatprep.subr.mxu0 0.0
      %1531 = vmatpush1.msra.mxu0 %v1475
      %1532 = vmatprep.subr.mxu0 0.0
      %1533 = vmatpush1.msra.mxu0 %v1476
      %1534 = vmatprep.subr.mxu0 0.0
      %1535 = vmatpush1.msra.mxu0 %v1477
      %1536 = vmatprep.subr.mxu0 0.0
      %1537 = vmatpush1.msra.mxu0 %v1478
      %1538 = vmatprep.subr.mxu0 0.0
      %1539 = vmatpush1.msra.mxu0 %v1479
      %1540 = vmatprep.subr.mxu0 0.0
      %1541 = vmatpush1.msra.mxu0 %v1480
      %1542 = vmatprep.subr.mxu0 0.0
      %1543 = vmatpush1.msra.mxu0 0.0
      %1544 = vmatprep.subr.mxu0 0.0
      %1545 = vmatpush1.msra.mxu0 0.0
      %1546 = vmatprep.subr.mxu0 0.0
      %1547 = vmatpush1.msra.mxu0 0.0
      %1548 = vmatprep.subr.mxu0 0.0
      %1549 = vmatpush1.msra.mxu0 0.0
      %1550 = vmatprep.subr.mxu0 0.0
      %1551 = vmatpush1.msra.mxu0 0.0
      %1552 = vmatprep.subr.mxu0 0.0
      %1553 = vmatpush1.msra.mxu0 0.0
      %1554 = vmatprep.subr.mxu0 0.0
      %1555 = vmatpush1.msra.mxu0 0.0
      %1556 = vmatprep.subr.mxu0 0.0
      %1557 = vmatpush1.msra.mxu0 0.0
      %1558 = vmatprep.subr.mxu0 0.0
      %1559 = vmatpush1.msra.mxu0 0.0
      %1560 = vmatprep.subr.mxu0 0.0
      %1561 = vmatpush1.msra.mxu0 0.0
      %1562 = vmatprep.mubr.f32.mxu0 %v1494
      %1563 = vmatmul.mubr.f32.gmra.mrb[0].mxu0 %v1488
      %v1564 = vpop.f32.mrb[0].mxu0
      %v1565 = vadd.f32 0.0, %v1564
      %v1566 = vpop.f32.mrb[0].mxu0
      %1567 = vmatprep.mubr.f32.mxu0 %v1496
      %1568 = vmatmul.mubr.f32.gmra.mrb[0].mxu0 %v1487
      %v1569 = vpop.f32.mrb[0].mxu0
      %v1570 = vadd.f32 0.0, %v1569
      %v1571 = vpop.f32.mrb[0].mxu0
      %1572 = vdwg.mxu0
      %v1574 = vsel %vm660, %v1430, 0
      %v1577 = vsel %vm660, %v1432, 0
      %1579 = vmatprep.subr.mxu0 0.0
      %1580 = vmatpush1.msra.mxu0 %v1433
      %1581 = vmatprep.subr.mxu0 0.0
      %1582 = vmatpush1.msra.mxu0 %v1434
      %1583 = vmatprep.subr.mxu0 0.0
      %1584 = vmatpush1.msra.mxu0 %v1435
      %1585 = vmatprep.subr.mxu0 0.0
      %1586 = vmatpush1.msra.mxu0 %v1436
      %1587 = vmatprep.subr.mxu0 0.0
      %1588 = vmatpush1.msra.mxu0 %v1437
      %1589 = vmatprep.subr.mxu0 0.0
      %1590 = vmatpush1.msra.mxu0 %v1438
      %1591 = vmatprep.subr.mxu0 0.0
      %1592 = vmatpush1.msra.mxu0 %v1439
      %1593 = vmatprep.subr.mxu0 0.0
      %1594 = vmatpush1.msra.mxu0 %v1440
      %1595 = vmatprep.subr.mxu0 0.0
      %1596 = vmatpush1.msra.mxu0 %v1441
      %1597 = vmatprep.subr.mxu0 0.0
      %1598 = vmatpush1.msra.mxu0 %v1442
      %1599 = vmatprep.subr.mxu0 0.0
      %1600 = vmatpush1.msra.mxu0 %v1443
      %1601 = vmatprep.subr.mxu0 0.0
      %1602 = vmatpush1.msra.mxu0 %v1444
      %1603 = vmatprep.subr.mxu0 0.0
      %1604 = vmatpush1.msra.mxu0 %v1445
      %1605 = vmatprep.subr.mxu0 0.0
      %1606 = vmatpush1.msra.mxu0 %v1446
      %1607 = vmatprep.subr.mxu0 0.0
      %1608 = vmatpush1.msra.mxu0 %v1447
      %1609 = vmatprep.subr.mxu0 0.0
      %1610 = vmatpush1.msra.mxu0 %v1448
      %1611 = vmatprep.subr.mxu0 0.0
      %1612 = vmatpush1.msra.mxu0 %v1449
      %1613 = vmatprep.subr.mxu0 0.0
      %1614 = vmatpush1.msra.mxu0 %v1450
      %1615 = vmatprep.subr.mxu0 0.0
      %1616 = vmatpush1.msra.mxu0 %v1451
      %1617 = vmatprep.subr.mxu0 0.0
      %1618 = vmatpush1.msra.mxu0 %v1452
      %1619 = vmatprep.subr.mxu0 0.0
      %1620 = vmatpush1.msra.mxu0 %v1453
      %1621 = vmatprep.subr.mxu0 0.0
      %1622 = vmatpush1.msra.mxu0 %v1454
      %1623 = vmatprep.subr.mxu0 0.0
      %1624 = vmatpush1.msra.mxu0 0.0
      %1625 = vmatprep.subr.mxu0 0.0
      %1626 = vmatpush1.msra.mxu0 0.0
      %1627 = vmatprep.subr.mxu0 0.0
      %1628 = vmatpush1.msra.mxu0 0.0
      %1629 = vmatprep.subr.mxu0 0.0
      %1630 = vmatpush1.msra.mxu0 0.0
      %1631 = vmatprep.subr.mxu0 0.0
      %1632 = vmatpush1.msra.mxu0 0.0
      %1633 = vmatprep.subr.mxu0 0.0
      %1634 = vmatpush1.msra.mxu0 0.0
      %1635 = vmatprep.subr.mxu0 0.0
      %1636 = vmatpush1.msra.mxu0 0.0
      %1637 = vmatprep.subr.mxu0 0.0
      %1638 = vmatpush1.msra.mxu0 0.0
      %1639 = vmatprep.subr.mxu0 0.0
      %1640 = vmatpush1.msra.mxu0 0.0
      %1641 = vmatprep.subr.mxu0 0.0
      %1642 = vmatpush1.msra.mxu0 0.0
      %1643 = vmatprep.mubr.f32.mxu0 %v1574
      %1644 = vmatmul.mubr.f32.gmra.mrb[0].mxu0 %v1429
      %v1645 = vpop.f32.mrb[0].mxu0
      %v1646 = vadd.f32 %v1565, %v1645
      %v1647 = vpop.f32.mrb[0].mxu0
      %1648 = vmatprep.mubr.f32.mxu0 %v1577
      %1649 = vmatmul.mubr.f32.gmra.mrb[0].mxu0 %v1431
      %v1650 = vpop.f32.mrb[0].mxu0
      %v1651 = vadd.f32 %v1570, %v1650
      %v1652 = vpop.f32.mrb[0].mxu0
      %1653 = vdwg.mxu0
      %v1654 = vld [vmem:[#allocation7] sm:$0xfc]
      %v1655 = vld [vmem:[#allocation7 + $0x8] sm:$0xfc]
      %v1656 = vld [vmem:[#allocation7 + $0x10] sm:$0x7]
      %v1657 = vld [vmem:[#allocation7 + $0x18] sm:$0x7]
      %v1658 = vld [vmem:[%s4 + $0x160] sm:$0xff]
      %v1659 = vld [vmem:[%s4 + $0x168] sm:$0xff]
      %v1660 = vld [vmem:[%s4 + $0x170] sm:$0xff]
      %v1661 = vld [vmem:[%s4 + $0x178] sm:$0xff]
      %v1662 = vld [vmem:[%s4 + $0x180] sm:$0xff]
      %v1663 = vld [vmem:[%s4 + $0x188] sm:$0xff]
      %v1664 = vld [vmem:[%s4 + $0x190] sm:$0xff]
      %v1665 = vld [vmem:[%s4 + $0x198] sm:$0xff]
      %v1666 = vld [vmem:[%s4 + $0x1a0] sm:$0xff]
      %v1667 = vld [vmem:[%s4 + $0x1a8] sm:$0xff]
      %v1668 = vld [vmem:[%s4 + $0x1b0] sm:$0xff]
      %v1669 = vld [vmem:[%s4 + $0x1b8] sm:$0xff]
      %v1670 = vld [vmem:[%s4 + $0x1c0] sm:$0xff]
      %v1671 = vld [vmem:[%s4 + $0x1c8] sm:$0xff]
      %v1672 = vld [vmem:[%s4 + $0x1d0] sm:$0xff]
      %v1673 = vld [vmem:[%s4 + $0x1d8] sm:$0xff]
      %v1674 = vld [vmem:[%s4 + $0x1e0] sm:$0xff]
      %v1675 = vld [vmem:[%s4 + $0x1e8] sm:$0xff]
      %v1676 = vld [vmem:[%s4 + $0x1f0] sm:$0xff]
      %v1677 = vld [vmem:[%s4 + $0x1f8] sm:$0xff]
      %v1678 = vld [vmem:[%s4 + $0x200] sm:$0xff]
      %v1679 = vld [vmem:[%s4 + $0x208] sm:$0xff]
      %vm1684 = vcmask 1045504
      %v1685 = vrot.slane %v1654, 2
      %v1686 = vrot.slane %v1656, 2
      %v1687 = vsel %vm1684, %v1685, %v1686
      %v1688 = vrot.slane %v1655, 2
      %v1689 = vrot.slane %v1657, 2
      %v1690 = vsel %vm1684, %v1688, %v1689
      %v1693 = vsel %vm660, %v1690, 0
      %v1695 = vsel %vm660, %v1689, 0
      %1697 = vmatprep.subr.mxu0 0.0
      %1698 = vmatpush1.msra.mxu0 %v1658
      %1699 = vmatprep.subr.mxu0 0.0
      %1700 = vmatpush1.msra.mxu0 %v1659
      %1701 = vmatprep.subr.mxu0 0.0
      %1702 = vmatpush1.msra.mxu0 %v1660
      %1703 = vmatprep.subr.mxu0 0.0
      %1704 = vmatpush1.msra.mxu0 %v1661
      %1705 = vmatprep.subr.mxu0 0.0
      %1706 = vmatpush1.msra.mxu0 %v1662
      %1707 = vmatprep.subr.mxu0 0.0
      %1708 = vmatpush1.msra.mxu0 %v1663
      %1709 = vmatprep.subr.mxu0 0.0
      %1710 = vmatpush1.msra.mxu0 %v1664
      %1711 = vmatprep.subr.mxu0 0.0
      %1712 = vmatpush1.msra.mxu0 %v1665
      %1713 = vmatprep.subr.mxu0 0.0
      %1714 = vmatpush1.msra.mxu0 %v1666
      %1715 = vmatprep.subr.mxu0 0.0
      %1716 = vmatpush1.msra.mxu0 %v1667
      %1717 = vmatprep.subr.mxu0 0.0
      %1718 = vmatpush1.msra.mxu0 %v1668
      %1719 = vmatprep.subr.mxu0 0.0
      %1720 = vmatpush1.msra.mxu0 %v1669
      %1721 = vmatprep.subr.mxu0 0.0
      %1722 = vmatpush1.msra.mxu0 %v1670
      %1723 = vmatprep.subr.mxu0 0.0
      %1724 = vmatpush1.msra.mxu0 %v1671
      %1725 = vmatprep.subr.mxu0 0.0
      %1726 = vmatpush1.msra.mxu0 %v1672
      %1727 = vmatprep.subr.mxu0 0.0
      %1728 = vmatpush1.msra.mxu0 %v1673
      %1729 = vmatprep.subr.mxu0 0.0
      %1730 = vmatpush1.msra.mxu0 %v1674
      %1731 = vmatprep.subr.mxu0 0.0
      %1732 = vmatpush1.msra.mxu0 %v1675
      %1733 = vmatprep.subr.mxu0 0.0
      %1734 = vmatpush1.msra.mxu0 %v1676
      %1735 = vmatprep.subr.mxu0 0.0
      %1736 = vmatpush1.msra.mxu0 %v1677
      %1737 = vmatprep.subr.mxu0 0.0
      %1738 = vmatpush1.msra.mxu0 %v1678
      %1739 = vmatprep.subr.mxu0 0.0
      %1740 = vmatpush1.msra.mxu0 %v1679
      %1741 = vmatprep.subr.mxu0 0.0
      %1742 = vmatpush1.msra.mxu0 0.0
      %1743 = vmatprep.subr.mxu0 0.0
      %1744 = vmatpush1.msra.mxu0 0.0
      %1745 = vmatprep.subr.mxu0 0.0
      %1746 = vmatpush1.msra.mxu0 0.0
      %1747 = vmatprep.subr.mxu0 0.0
      %1748 = vmatpush1.msra.mxu0 0.0
      %1749 = vmatprep.subr.mxu0 0.0
      %1750 = vmatpush1.msra.mxu0 0.0
      %1751 = vmatprep.subr.mxu0 0.0
      %1752 = vmatpush1.msra.mxu0 0.0
      %1753 = vmatprep.subr.mxu0 0.0
      %1754 = vmatpush1.msra.mxu0 0.0
      %1755 = vmatprep.subr.mxu0 0.0
      %1756 = vmatpush1.msra.mxu0 0.0
      %1757 = vmatprep.subr.mxu0 0.0
      %1758 = vmatpush1.msra.mxu0 0.0
      %1759 = vmatprep.subr.mxu0 0.0
      %1760 = vmatpush1.msra.mxu0 0.0
      %1761 = vmatprep.mubr.f32.mxu0 %v1693
      %1762 = vmatmul.mubr.f32.gmra.mrb[0].mxu0 %v1687
      %v1763 = vpop.f32.mrb[0].mxu0
      %v1764 = vadd.f32 0.0, %v1763
      %v1765 = vpop.f32.mrb[0].mxu0
      %1766 = vmatprep.mubr.f32.mxu0 %v1695
      %1767 = vmatmul.mubr.f32.gmra.mrb[0].mxu0 %v1686
      %v1768 = vpop.f32.mrb[0].mxu0
      %v1769 = vadd.f32 0.0, %v1768
      %v1770 = vpop.f32.mrb[0].mxu0
      %1771 = vdwg.mxu0
      %v1772 = vadd.f32 %v1646, %v1764
      %v1773 = vadd.f32 %v1651, %v1769
      %v1774 = vmax.f32 %v1772, 0.0
      %v1775 = vmax.f32 %v1773, 0.0
      %v1776 = vld [vmem:[%s7] sm:$0xff]
      %v1777 = vld [vmem:[%s7 + $0x8] sm:$0xff]
      %v1778 = vld [vmem:[%s7 + $0x10] sm:$0xff]
      %v1779 = vld [vmem:[%s7 + $0x18] sm:$0xff]
      %v1780 = vld [vmem:[%s7 + $0x20] sm:$0xff]
      %v1781 = vld [vmem:[%s7 + $0x28] sm:$0xff]
      %v1782 = vld [vmem:[%s7 + $0x30] sm:$0x3f]
      %vm1783 = vcmask 441344
      %v1785 = vsel %vm1783, %v1774, 0
      %v1788 = vsel %vm1783, %v1775, 0
      %v1791 = vsel %vm1684, %v1782, 0
      %1793 = vmatprep.subr.mxu0 0.0
      %1794 = vmatpush1.msra.mxu0 %v1776
      %1795 = vmatprep.subr.mxu0 0.0
      %1796 = vmatpush1.msra.mxu0 %v1777
      %1797 = vmatprep.subr.mxu0 0.0
      %1798 = vmatpush1.msra.mxu0 %v1778
      %1799 = vmatprep.subr.mxu0 0.0
      %1800 = vmatpush1.msra.mxu0 %v1779
      %1801 = vmatprep.subr.mxu0 0.0
      %1802 = vmatpush1.msra.mxu0 %v1780
      %1803 = vmatprep.subr.mxu0 0.0
      %1804 = vmatpush1.msra.mxu0 %v1781
      %1805 = vmatprep.subr.mxu0 0.0
      %1806 = vmatpush1.msra.mxu0 %v1791
      %1807 = vmatprep.subr.mxu0 0.0
      %1808 = vmatpush1.msra.mxu0 0.0
      %1809 = vmatprep.subr.mxu0 0.0
      %1810 = vmatpush1.msra.mxu0 0.0
      %1811 = vmatprep.subr.mxu0 0.0
      %1812 = vmatpush1.msra.mxu0 0.0
      %1813 = vmatprep.subr.mxu0 0.0
      %1814 = vmatpush1.msra.mxu0 0.0
      %1815 = vmatprep.subr.mxu0 0.0
      %1816 = vmatpush1.msra.mxu0 0.0
      %1817 = vmatprep.subr.mxu0 0.0
      %1818 = vmatpush1.msra.mxu0 0.0
      %1819 = vmatprep.subr.mxu0 0.0
      %1820 = vmatpush1.msra.mxu0 0.0
      %1821 = vmatprep.subr.mxu0 0.0
      %1822 = vmatpush1.msra.mxu0 0.0
      %1823 = vmatprep.subr.mxu0 0.0
      %1824 = vmatpush1.msra.mxu0 0.0
      %1825 = vmatprep.subr.mxu0 0.0
      %1826 = vmatpush1.msra.mxu0 0.0
      %1827 = vmatprep.subr.mxu0 0.0
      %1828 = vmatpush1.msra.mxu0 0.0
      %1829 = vmatprep.subr.mxu0 0.0
      %1830 = vmatpush1.msra.mxu0 0.0
      %1831 = vmatprep.subr.mxu0 0.0
      %1832 = vmatpush1.msra.mxu0 0.0
      %1833 = vmatprep.subr.mxu0 0.0
      %1834 = vmatpush1.msra.mxu0 0.0
      %1835 = vmatprep.subr.mxu0 0.0
      %1836 = vmatpush1.msra.mxu0 0.0
      %1837 = vmatprep.subr.mxu0 0.0
      %1838 = vmatpush1.msra.mxu0 0.0
      %1839 = vmatprep.subr.mxu0 0.0
      %1840 = vmatpush1.msra.mxu0 0.0
      %1841 = vmatprep.subr.mxu0 0.0
      %1842 = vmatpush1.msra.mxu0 0.0
      %1843 = vmatprep.subr.mxu0 0.0
      %1844 = vmatpush1.msra.mxu0 0.0
      %1845 = vmatprep.subr.mxu0 0.0
      %1846 = vmatpush1.msra.mxu0 0.0
      %1847 = vmatprep.subr.mxu0 0.0
      %1848 = vmatpush1.msra.mxu0 0.0
      %1849 = vmatprep.subr.mxu0 0.0
      %1850 = vmatpush1.msra.mxu0 0.0
      %1851 = vmatprep.subr.mxu0 0.0
      %1852 = vmatpush1.msra.mxu0 0.0
      %1853 = vmatprep.subr.mxu0 0.0
      %1854 = vmatpush1.msra.mxu0 0.0
      %1855 = vmatprep.subr.mxu0 0.0
      %1856 = vmatpush1.msra.mxu0 0.0
      %1857 = vmatprep.mubr.f32.mxu0 0.0
      %1858 = vmatmul.mubr.f32.gmra.mrb[0].mxu0 %v1785
      %v1859 = vpop.f32.mrb[0].mxu0
      %v1860 = vadd.f32 0.0, %v1859
      %v1861 = vpop.f32.mrb[0].mxu0
      %1862 = vmatprep.mubr.f32.mxu0 0.0
      %1863 = vmatmul.mubr.f32.gmra.mrb[0].mxu0 %v1788
      %v1864 = vpop.f32.mrb[0].mxu0
      %v1865 = vadd.f32 0.0, %v1864
      %v1866 = vpop.f32.mrb[0].mxu0
      %1867 = vdwg.mxu0
      %vm1868 = vcmask 876544
      %1869 = vst.msk [vmem:[#allocation8] sm:$0x1] %vm1868, %v1860
      %vm1870 = vcmask 877569
      %1871 = vst.msk [vmem:[#allocation8 + $0x1] sm:$0x2] %vm1870, %v1860
      %vm1872 = vcmask 878594
      %1873 = vst.msk [vmem:[#allocation8 + $0x2] sm:$0x4] %vm1872, %v1860
      %vm1874 = vcmask 879619
      %1875 = vst.msk [vmem:[#allocation8 + $0x3] sm:$0x8] %vm1874, %v1860
      %vm1876 = vcmask 880644
      %1877 = vst.msk [vmem:[#allocation8 + $0x4] sm:$0x10] %vm1876, %v1860
      %vm1878 = vcmask 881669
      %1879 = vst.msk [vmem:[#allocation8 + $0x5] sm:$0x20] %vm1878, %v1860
      %vm1880 = vcmask 882694
      %1881 = vst.msk [vmem:[#allocation8 + $0x6] sm:$0x40] %vm1880, %v1860
      %vm1882 = vcmask 883719
      %1883 = vst.msk [vmem:[#allocation8 + $0x7] sm:$0x80] %vm1882, %v1860
      %1884 = vst.msk [vmem:[#allocation8 + $0x10] sm:$0x1] %vm1868, %v1865
      %v1885 = vld [vmem:[%s8] sm:$0xff]
      %v1886 = vld [vmem:[%s8 + $0x8] sm:$0xff]
      %v1887 = vld [vmem:[%s8 + $0x10] sm:$0xff]
      %v1888 = vld [vmem:[%s8 + $0x18] sm:$0xff]
      %v1889 = vld [vmem:[%s8 + $0x20] sm:$0xff]
      %v1890 = vld [vmem:[%s8 + $0x28] sm:$0xff]
      %v1891 = vld [vmem:[%s8 + $0x30] sm:$0x3f]
      %v1893 = vsel %vm1684, %v1891, 0
      %1895 = vmatprep.subr.mxu0 0.0
      %1896 = vmatpush1.msra.mxu0 %v1885
      %1897 = vmatprep.subr.mxu0 0.0
      %1898 = vmatpush1.msra.mxu0 %v1886
      %1899 = vmatprep.subr.mxu0 0.0
      %1900 = vmatpush1.msra.mxu0 %v1887
      %1901 = vmatprep.subr.mxu0 0.0
      %1902 = vmatpush1.msra.mxu0 %v1888
      %1903 = vmatprep.subr.mxu0 0.0
      %1904 = vmatpush1.msra.mxu0 %v1889
      %1905 = vmatprep.subr.mxu0 0.0
      %1906 = vmatpush1.msra.mxu0 %v1890
      %1907 = vmatprep.subr.mxu0 0.0
      %1908 = vmatpush1.msra.mxu0 %v1893
      %1909 = vmatprep.subr.mxu0 0.0
      %1910 = vmatpush1.msra.mxu0 0.0
      %1911 = vmatprep.subr.mxu0 0.0
      %1912 = vmatpush1.msra.mxu0 0.0
      %1913 = vmatprep.subr.mxu0 0.0
      %1914 = vmatpush1.msra.mxu0 0.0
      %1915 = vmatprep.subr.mxu0 0.0
      %1916 = vmatpush1.msra.mxu0 0.0
      %1917 = vmatprep.subr.mxu0 0.0
      %1918 = vmatpush1.msra.mxu0 0.0
      %1919 = vmatprep.subr.mxu0 0.0
      %1920 = vmatpush1.msra.mxu0 0.0
      %1921 = vmatprep.subr.mxu0 0.0
      %1922 = vmatpush1.msra.mxu0 0.0
      %1923 = vmatprep.subr.mxu0 0.0
      %1924 = vmatpush1.msra.mxu0 0.0
      %1925 = vmatprep.subr.mxu0 0.0
      %1926 = vmatpush1.msra.mxu0 0.0
      %1927 = vmatprep.subr.mxu0 0.0
      %1928 = vmatpush1.msra.mxu0 0.0
      %1929 = vmatprep.subr.mxu0 0.0
      %1930 = vmatpush1.msra.mxu0 0.0
      %1931 = vmatprep.subr.mxu0 0.0
      %1932 = vmatpush1.msra.mxu0 0.0
      %1933 = vmatprep.subr.mxu0 0.0
      %1934 = vmatpush1.msra.mxu0 0.0
      %1935 = vmatprep.subr.mxu0 0.0
      %1936 = vmatpush1.msra.mxu0 0.0
      %1937 = vmatprep.subr.mxu0 0.0
      %1938 = vmatpush1.msra.mxu0 0.0
      %1939 = vmatprep.subr.mxu0 0.0
      %1940 = vmatpush1.msra.mxu0 0.0
      %1941 = vmatprep.subr.mxu0 0.0
      %1942 = vmatpush1.msra.mxu0 0.0
      %1943 = vmatprep.subr.mxu0 0.0
      %1944 = vmatpush1.msra.mxu0 0.0
      %1945 = vmatprep.subr.mxu0 0.0
      %1946 = vmatpush1.msra.mxu0 0.0
      %1947 = vmatprep.subr.mxu0 0.0
      %1948 = vmatpush1.msra.mxu0 0.0
      %1949 = vmatprep.subr.mxu0 0.0
      %1950 = vmatpush1.msra.mxu0 0.0
      %1951 = vmatprep.subr.mxu0 0.0
      %1952 = vmatpush1.msra.mxu0 0.0
      %1953 = vmatprep.subr.mxu0 0.0
      %1954 = vmatpush1.msra.mxu0 0.0
      %1955 = vmatprep.subr.mxu0 0.0
      %1956 = vmatpush1.msra.mxu0 0.0
      %1957 = vmatprep.subr.mxu0 0.0
      %1958 = vmatpush1.msra.mxu0 0.0
      %1959 = vmatprep.mubr.f32.mxu0 0.0
      %1960 = vmatmul.mubr.f32.gmra.mrb[0].mxu0 %v1785
      %v1961 = vpop.f32.mrb[0].mxu0
      %v1962 = vadd.f32 0.0, %v1961
      %v1963 = vpop.f32.mrb[0].mxu0
      %1964 = vmatprep.mubr.f32.mxu0 0.0
      %1965 = vmatmul.mubr.f32.gmra.mrb[0].mxu0 %v1788
      %v1966 = vpop.f32.mrb[0].mxu0
      %v1967 = vadd.f32 0.0, %v1966
      %v1968 = vpop.f32.mrb[0].mxu0
      %1969 = vdwg.mxu0
      %1970 = vst.msk [vmem:[#allocation8 + $0x1] sm:$0x1] %vm1868, %v1962
      %1971 = vst.msk [vmem:[#allocation8 + $0x2] sm:$0x2] %vm1870, %v1962
      %1972 = vst.msk [vmem:[#allocation8 + $0x3] sm:$0x4] %vm1872, %v1962
      %1973 = vst.msk [vmem:[#allocation8 + $0x4] sm:$0x8] %vm1874, %v1962
      %1974 = vst.msk [vmem:[#allocation8 + $0x5] sm:$0x10] %vm1876, %v1962
      %1975 = vst.msk [vmem:[#allocation8 + $0x6] sm:$0x20] %vm1878, %v1962
      %1976 = vst.msk [vmem:[#allocation8 + $0x7] sm:$0x40] %vm1880, %v1962
      %1977 = vst.msk [vmem:[#allocation8 + $0x8] sm:$0x80] %vm1882, %v1962
      %1978 = vst.msk [vmem:[#allocation8 + $0x11] sm:$0x1] %vm1868, %v1967
      %v1979 = vld [vmem:[#allocation8] sm:$0xff]
      %v1980 = vld [vmem:[#allocation8 + $0x8] sm:$0xff]
      %v1981 = vld [vmem:[#allocation8 + $0x10] sm:$0x3]
      %v1982 = vld [vmem:[%s9] sm:$0xff]
      %v1983 = vld [vmem:[%s9 + $0x8] sm:$0xff]
      %v1984 = vld [vmem:[%s9 + $0x10] sm:$0xff]
      %v1985 = vld [vmem:[%s9 + $0x18] sm:$0xff]
      %v1986 = vld [vmem:[%s9 + $0x20] sm:$0xff]
      %v1987 = vld [vmem:[%s9 + $0x28] sm:$0xff]
      %v1988 = vld [vmem:[%s9 + $0x30] sm:$0xff]
      %v1989 = vld [vmem:[%s9 + $0x38] sm:$0xff]
      %v1990 = vld [vmem:[%s9 + $0x40] sm:$0xff]
      %v1991 = vld [vmem:[%s9 + $0x48] sm:$0xff]
      %v1992 = vld [vmem:[%s9 + $0x50] sm:$0xff]
      %v1993 = vld [vmem:[%s9 + $0x58] sm:$0xff]
      %v1994 = vld [vmem:[%s9 + $0x60] sm:$0xff]
      %v1995 = vld [vmem:[%s9 + $0x68] sm:$0xf]
      %vm1996 = vcmask 883712
      %v1998 = vsel %vm1996, %v1979, 0
      %v2001 = vsel %vm1996, %v1980, 0
      %v2004 = vsel %vm1996, %v1981, 0
      %v2007 = vsel %vm698, %v1995, 0
      %2009 = vmatprep.subr.mxu0 0.0
      %2010 = vmatpush1.msra.mxu0 %v1982
      %2011 = vmatprep.subr.mxu0 0.0
      %2012 = vmatpush1.msra.mxu0 %v1983
      %2013 = vmatprep.subr.mxu0 0.0
      %2014 = vmatpush1.msra.mxu0 %v1984
      %2015 = vmatprep.subr.mxu0 0.0
      %2016 = vmatpush1.msra.mxu0 %v1985
      %2017 = vmatprep.subr.mxu0 0.0
      %2018 = vmatpush1.msra.mxu0 %v1986
      %2019 = vmatprep.subr.mxu0 0.0
      %2020 = vmatpush1.msra.mxu0 %v1987
      %2021 = vmatprep.subr.mxu0 0.0
      %2022 = vmatpush1.msra.mxu0 %v1988
      %2023 = vmatprep.subr.mxu0 0.0
      %2024 = vmatpush1.msra.mxu0 %v1989
      %2025 = vmatprep.subr.mxu0 0.0
      %2026 = vmatpush1.msra.mxu0 %v1990
      %2027 = vmatprep.subr.mxu0 0.0
      %2028 = vmatpush1.msra.mxu0 %v1991
      %2029 = vmatprep.subr.mxu0 0.0
      %2030 = vmatpush1.msra.mxu0 %v1992
      %2031 = vmatprep.subr.mxu0 0.0
      %2032 = vmatpush1.msra.mxu0 %v1993
      %2033 = vmatprep.subr.mxu0 0.0
      %2034 = vmatpush1.msra.mxu0 %v1994
      %2035 = vmatprep.subr.mxu0 0.0
      %2036 = vmatpush1.msra.mxu0 %v2007
      %2037 = vmatprep.subr.mxu0 0.0
      %2038 = vmatpush1.msra.mxu0 0.0
      %2039 = vmatprep.subr.mxu0 0.0
      %2040 = vmatpush1.msra.mxu0 0.0
      %2041 = vmatprep.subr.mxu0 0.0
      %2042 = vmatpush1.msra.mxu0 0.0
      %2043 = vmatprep.subr.mxu0 0.0
      %2044 = vmatpush1.msra.mxu0 0.0
      %2045 = vmatprep.subr.mxu0 0.0
      %2046 = vmatpush1.msra.mxu0 0.0
      %2047 = vmatprep.subr.mxu0 0.0
      %2048 = vmatpush1.msra.mxu0 0.0
      %2049 = vmatprep.subr.mxu0 0.0
      %2050 = vmatpush1.msra.mxu0 0.0
      %2051 = vmatprep.subr.mxu0 0.0
      %2052 = vmatpush1.msra.mxu0 0.0
      %2053 = vmatprep.subr.mxu0 0.0
      %2054 = vmatpush1.msra.mxu0 0.0
      %2055 = vmatprep.subr.mxu0 0.0
      %2056 = vmatpush1.msra.mxu0 0.0
      %2057 = vmatprep.subr.mxu0 0.0
      %2058 = vmatpush1.msra.mxu0 0.0
      %2059 = vmatprep.subr.mxu0 0.0
      %2060 = vmatpush1.msra.mxu0 0.0
      %2061 = vmatprep.subr.mxu0 0.0
      %2062 = vmatpush1.msra.mxu0 0.0
      %2063 = vmatprep.subr.mxu0 0.0
      %2064 = vmatpush1.msra.mxu0 0.0
      %2065 = vmatprep.subr.mxu0 0.0
      %2066 = vmatpush1.msra.mxu0 0.0
      %2067 = vmatprep.subr.mxu0 0.0
      %2068 = vmatpush1.msra.mxu0 0.0
      %2069 = vmatprep.subr.mxu0 0.0
      %2070 = vmatpush1.msra.mxu0 0.0
      %2071 = vmatprep.subr.mxu0 0.0
      %2072 = vmatpush1.msra.mxu0 0.0
      %2073 = vmatprep.mubr.f32.mxu0 0.0
      %2074 = vmatmul.mubr.f32.gmra.mrb[0].mxu0 %v1998
      %v2075 = vpop.f32.mrb[0].mxu0
      %v2076 = vadd.f32 0.0, %v2075
      %v2077 = vpop.f32.mrb[0].mxu0
      %2078 = vmatprep.mubr.f32.mxu0 0.0
      %2079 = vmatmul.mubr.f32.gmra.mrb[0].mxu0 %v2001
      %v2080 = vpop.f32.mrb[0].mxu0
      %v2081 = vadd.f32 0.0, %v2080
      %v2082 = vpop.f32.mrb[0].mxu0
      %2083 = vmatprep.mubr.f32.mxu0 0.0
      %2084 = vmatmul.mubr.f32.gmra.mrb[0].mxu0 %v2004
      %v2085 = vpop.f32.mrb[0].mxu0
      %v2086 = vadd.f32 0.0, %v2085
      %v2087 = vpop.f32.mrb[0].mxu0
      %2088 = vdwg.mxu0
      %v2089 = vsub.f32 0.0, %v2076
      %v2090 = vsub.f32 0.0, %v2081
      %v2091 = vsub.f32 0.0, %v2086
      %v2092 = vmul.f32 %v2089, 1.442695
      %v2093 = vpow.pop %v2092
      %v2094 = vmul.f32 %v2090, 1.442695
      %v2095 = vpow.pop %v2094
      %v2096 = vmul.f32 %v2091, 1.442695
      %v2097 = vpow.pop %v2096
      %v2098 = vadd.f32 %v2093, 1.0
      %v2099 = vadd.f32 %v2095, 1.0
      %v2100 = vadd.f32 %v2097, 1.0
      %v2101 = vrcp.pop %v2098
      %v2102 = vmul.f32 1.0, %v2101
      %v2103 = vrcp.pop %v2099
      %v2104 = vmul.f32 1.0, %v2103
      %v2105 = vrcp.pop %v2100
      %v2106 = vmul.f32 1.0, %v2105
      %2107 = vst.msk [vmem:[%s359] sm:$0xff] %vm360, %v2102
      %2108 = vst.msk [vmem:[%s359 + $0x8] sm:$0xff] %vm360, %v2104
      %2109 = vst.msk [vmem:[%s359 + $0x10] sm:$0x3] %vm363, %v2106
      %p2110 = scmp.lt.s32.totalorder %s21, 1
      %s2111 = scalar_select %p2110, %s21, 1
      %s2112 = smul.addr %s2111, 3
      %s2113 = smul.addr %s2112, 8
      %s2114 = scalar_lea.vmem %s10, %s2113
      // Predicated region
      $region61: #{autoencoder_forward.1} parent=59 // pred_check
        %p2115 = pneg %p254
      $region62: #{autoencoder_forward.1} parent=59 // pred_check_branch
        %2117 = sbr.rel (%p2115) target = $region64
      $region63: #{autoencoder_forward.1} parent=59 // pred_region
        _
      $region64: #{autoencoder_forward.1} parent=59 // pred_fallthru
        _
    $region60: #{autoencoder_forward.1} parent=5 // pred_fallthru
      _
    %p2118 = scmp.le.s32.totalorder 2, %s16
    // Predicated region
    $region65: #{autoencoder_forward.1} parent=5 // pred_check
      %p2119 = pneg %p2118
    $region66: #{autoencoder_forward.1} parent=5 // pred_check_branch
      %2121 = sbr.rel (%p2119) target = $region68
    $region67: #{autoencoder_forward.1} parent=5 // pred_region
      %s2122 = ssub.s32 %s16, 2
      // Predicated region
      $region69: #{autoencoder_forward.1} parent=67 // pred_check
        %p2123 = pneg %p260
      $region70: #{autoencoder_forward.1} parent=67 // pred_check_branch
        %2125 = sbr.rel (%p2123) target = $region72
      $region71: #{autoencoder_forward.1} parent=67 // pred_region
        %p2126 = scmp.lt.s32.totalorder %s22, 1
        %s2127 = scalar_select %p2126, %s22, 1
        %s2128 = smul.addr %s2127, 3
        %s2129 = smul.addr %s2128, 8
        %s2130 = scalar_lea.vmem %s10, %s2129
      $region72: #{autoencoder_forward.1} parent=67 // pred_fallthru
        _
    $region68: #{autoencoder_forward.1} parent=5 // pred_fallthru
      _
  $region6: #{autoencoder_forward.1} parent=0 // loop_footer
    %s20 = sadd.s32 1, %s16
  $region7: #{autoencoder_forward.1} parent=0 // loop_footer_branch
    %15 = sbr.rel target = $region3
  $region8: #{autoencoder_forward.1} parent=0 // loop_exit
    _

</llo_original>
